<compile_context>
chip_gen: v7x
topology: tpu7x:2x2x1
jax: 0.10.0
libtpu: 0.0.40
codegen_flags: <defaults>
</compile_context>

<pallas_src>
import numpy as np
import jax
import jax.numpy as jnp
from jax import lax
from jax.experimental import pallas as pl
from jax.experimental.pallas import tpu as pltpu

H_IN, W_IN = 256, 2              # WiSig input: (N, 1, 256, 2)
FC_OUT = 128
FEAT_H, FEAT_C = 16, 16          # feature map after the conv stack (per sample)
P0 = 16                          # h-positions packed per row at the input
ROWS_PER_SAMPLE = H_IN // P0     # = 16, constant through the whole stack


# ----------------------------- Pallas kernel ------------------------------ #
def _wisig_kernel(x_ref, m1_ref, b1_ref, m2_ref, b2_ref, m3_ref, b3_ref,
                  m4_ref, b4_ref, m5_ref, b5_ref, wfc_ref, bfc_ref,
                  out_ref, scr_ref):
    f32 = jnp.float32
    B = out_ref.shape[0]                     # samples in this block
    R = x_ref.shape[0]                       # B * 16 rows (every stage)

    def roll_down(v):                        # row r <- v[r-1] (cyclic, masked later)
        return jnp.concatenate([v[-1:, :], v[:-1, :]], axis=0)

    def roll_up(v):                          # row r <- v[r+1]
        return jnp.concatenate([v[1:, :], v[:1, :]], axis=0)

    def conv(xp, m_ref, b_ref, P, W, Co):
        # One merged MXU matmul per conv layer.  Result columns are laid out
        # [prev-row taps | same-row taps | next-row taps].
        WCo = W * Co
        y = jnp.dot(xp, m_ref[...], preferred_element_type=f32)
        rid = lax.broadcasted_iota(jnp.int32, (R, WCo), 0) % ROWS_PER_SAMPLE
        pv = jnp.where(rid == 0, 0.0, roll_down(y[:, 0:WCo]))
        nx = jnp.where(rid == ROWS_PER_SAMPLE - 1, 0.0,
                       roll_up(y[:, (P + 1) * WCo:(P + 2) * WCo]))
        body = y[:, WCo:(P + 1) * WCo]
        if P == 1:
            out = body + pv + nx
        elif P == 2:
            out = jnp.concatenate([body[:, :WCo] + pv, body[:, WCo:] + nx],
                                  axis=1)
        else:
            out = jnp.concatenate(
                [body[:, :WCo] + pv,
                 body[:, WCo:(P - 1) * WCo],
                 body[:, (P - 1) * WCo:] + nx], axis=1)
        return out + b_ref[...]

    def pool_h(x, P, WC):
        # MaxPool2d((2,1)): max over adjacent j groups (pure lane slices).
        pieces = [jnp.maximum(x[:, (2 * j) * WC:(2 * j + 1) * WC],
                              x[:, (2 * j + 1) * WC:(2 * j + 2) * WC])
                  for j in range(P // 2)]
        return pieces[0] if len(pieces) == 1 else jnp.concatenate(pieces, axis=1)

    def pool_hw(x, P, C):
        # MaxPool2d((2,2)) on a W=2 layout: max over j pairs and both w.
        pieces = []
        for j in range(P // 2):
            base0 = (2 * j) * 2 * C
            base1 = (2 * j + 1) * 2 * C
            a = x[:, base0:base0 + C]
            b = x[:, base0 + C:base0 + 2 * C]
            c = x[:, base1:base1 + C]
            d = x[:, base1 + C:base1 + 2 * C]
            pieces.append(jnp.maximum(jnp.maximum(a, b), jnp.maximum(c, d)))
        return pieces[0] if len(pieces) == 1 else jnp.concatenate(pieces, axis=1)

    relu = lambda v: jnp.maximum(v, 0.0)

    xp = x_ref[...].astype(f32)                           # (R, 32)  P=16,W=2,C=1
    h = relu(conv(xp, m1_ref, b1_ref, 16, 2, 8))          # (R, 256) P=16,C=8
    h = pool_h(h, 16, 16)                                 # (R, 128) P=8
    h = relu(conv(h, m2_ref, b2_ref, 8, 2, 16))           # (R, 256) P=8, C=16
    h = pool_h(h, 8, 32)                                  # (R, 128) P=4
    h = relu(conv(h, m3_ref, b3_ref, 4, 2, 16))           # (R, 128) P=4, C=16
    h = pool_hw(h, 4, 16)                                 # (R, 32)  P=2,W=1,C=16
    h = relu(conv(h, m4_ref, b4_ref, 2, 1, 32))           # (R, 64)  P=2, C=32
    h = pool_h(h, 2, 32)                                  # (R, 32)  P=1, C=32
    feat = conv(h, m5_ref, b5_ref, 1, 1, 16)              # (R, 16)  P=1, C=16

    # Flatten (NCHW: c*16 + h) + Linear(256,128) as ONE matmul: stage the
    # feature map in scratch, regather per-h row sets with static stride-16
    # sublane loads, lay them out lane-dense as (B, 256).
    scr_ref[...] = feat
    flat = jnp.concatenate(
        [scr_ref[pl.ds(hh, B, ROWS_PER_SAMPLE), :]
         for hh in range(ROWS_PER_SAMPLE)], axis=1)        # (B, 256) col=h*16+c
    z = jnp.dot(flat, wfc_ref[...], preferred_element_type=f32) + bfc_ref[...]
    z = jnp.maximum(z, 0.0)                                # ReLU
    ss = jnp.sum(z * z, axis=1, keepdims=True)
    z = z * lax.rsqrt(jnp.maximum(ss, 1e-24))              # F.normalize(dim=1)
    out_ref[...] = z.astype(out_ref.dtype)


# ------------------------- parameter repacking (glue) ---------------------- #
def _pack_conv(Wt, bias, P, W):
    """Pack torch conv weight (Co,Ci,3,Kw), padding='same', for the packed-H
    layout (col = j*(W*C) + w*C + c).  Returns ([M_prev|M_same|M_next], bias row)
    with M_cat of shape (P*W*Ci, (P+2)*W*Co)."""
    Wt = np.asarray(Wt, np.float32)
    Co, Ci, Kh, Kw = Wt.shape
    assert Kh == 3
    WCi, WCo = W * Ci, W * Co
    m_same = np.zeros((P * WCi, P * WCo), np.float32)
    m_prev = np.zeros((P * WCi, WCo), np.float32)   # columns = j_out==0 group
    m_next = np.zeros((P * WCi, WCo), np.float32)   # columns = j_out==P-1 group
    for j_out in range(P):
        for kh in range(3):
            jj = j_out - 1 + kh                      # input j (may cross rows)
            for w_out in range(W):
                for kw in range(Kw):
                    w_in = w_out + kw
                    if w_in >= W:                    # 'same' right pad (even Kw)
                        continue
                    blk = Wt[:, :, kh, kw].T         # (Ci, Co)
                    if 0 <= jj < P:
                        r0 = jj * WCi + w_in * Ci
                        c0 = j_out * WCo + w_out * Co
                        m_same[r0:r0 + Ci, c0:c0 + Co] += blk
                    elif jj == -1:                   # previous row, its j = P-1
                        r0 = (P - 1) * WCi + w_in * Ci
                        m_prev[r0:r0 + Ci, w_out * Co:w_out * Co + Co] += blk
                    elif jj == P:                    # next row, its j = 0
                        m_next[w_in * Ci:w_in * Ci + Ci,
                               w_out * Co:w_out * Co + Co] += blk
    m_cat = np.concatenate([m_prev, m_same, m_next], axis=1)
    b_row = np.tile(np.asarray(bias, np.float32), P * W)[None, :]
    return jnp.asarray(m_cat), jnp.asarray(b_row)


def wisig_forward_pallas(x, params, block_b=32):
    """x: (N, 1, 256, 2) float32 (NCHW, like the PyTorch module)."""
    N = x.shape[0]
    (w1, c1), (w2, c2), (w3, c3), (w4, c4), (w5, c5), (wfc, bfc) = params

    M1, B1 = _pack_conv(w1, c1, 16, 2)
    M2, B2 = _pack_conv(w2, c2, 8, 2)
    M3, B3 = _pack_conv(w3, c3, 4, 2)
    M4, B4 = _pack_conv(w4, c4, 2, 1)
    M5, B5 = _pack_conv(w5, c5, 1, 1)
    # Flatten(c*16+h) fused with Linear: Wfcp[h*16+c, j] = wfc[j, c*16+h]
    Wfcp = jnp.asarray(
        np.transpose(np.asarray(wfc, np.float32).reshape(FC_OUT, FEAT_C, FEAT_H),
                     (2, 1, 0)).reshape(FEAT_H * FEAT_C, FC_OUT))
    Bfc = jnp.asarray(np.asarray(bfc, np.float32)[None, :])

    # Batch blocking: bb samples per grid step (16 rows per sample).
    if N <= block_b:
        bb = N                                 # single block == full arrays
    else:
        bb = max(8, (block_b // 8) * 8)        # keep output block (bb,128) tileable
    Np = ((N + bb - 1) // bb) * bb

    # Lane-dense input packing: row = b*16 + g, col = j*2 + w (h = 16*g + j).
    # This is a free row-major reshape of the contiguous NCHW input.
    x_pack = x[:, 0, :, :].astype(jnp.float32).reshape(N * ROWS_PER_SAMPLE, 2 * P0)
    if Np != N:
        x_pack = jnp.pad(x_pack, ((0, (Np - N) * ROWS_PER_SAMPLE), (0, 0)))

    weights = [M1, B1, M2, B2, M3, B3, M4, B4, M5, B5, Wfcp, Bfc]

    def const_spec(a):
        return pl.BlockSpec(a.shape, lambda i: (0, 0))

    in_specs = [pl.BlockSpec((bb * ROWS_PER_SAMPLE, 2 * P0), lambda i: (i, 0))]
    in_specs += [const_spec(a) for a in weights]

    macs = Np * ROWS_PER_SAMPLE * sum(int(m.shape[0]) * int(m.shape[1])
                                      for m in (M1, M2, M3, M4, M5))
    macs += Np * FEAT_H * FEAT_C * FC_OUT
    bytes_accessed = 4 * (int(x_pack.size) + Np * FC_OUT
                          + sum(int(w.size) for w in weights))
    cost = pl.CostEstimate(flops=2 * int(macs), transcendentals=int(Np),
                           bytes_accessed=int(bytes_accessed))

    out = pl.pallas_call(
        _wisig_kernel,
        out_shape=jax.ShapeDtypeStruct((Np, FC_OUT), jnp.float32),
        grid=(Np // bb,),
        in_specs=in_specs,
        out_specs=pl.BlockSpec((bb, FC_OUT), lambda i: (i, 0)),
        scratch_shapes=[pltpu.VMEM((bb * ROWS_PER_SAMPLE, FEAT_C), jnp.float32)],
        compiler_params=pltpu.CompilerParams(
            dimension_semantics=("parallel",),
            vmem_limit_bytes=32 * 1024 * 1024),
        cost_estimate=cost,
    )(x_pack, *weights)
    return out[:N]


# --------------------------- reference (plain JAX) ------------------------- #
def wisig_forward_reference(x, params):
    (w1, b1), (w2, b2), (w3, b3), (w4, b4), (w5, b5), (wfc, bfc) = params

    def conv(h, w, b):
        kh, kw = w.shape[2], w.shape[3]
        y = lax.conv_general_dilated(
            h, w, window_strides=(1, 1),
            padding=(((kh - 1) // 2, kh - 1 - (kh - 1) // 2), (0, kw - 1)),
            dimension_numbers=('NCHW', 'OIHW', 'NCHW'))
        return y + b[None, :, None, None]

    def mpool(h, ph, pw):
        return lax.reduce_window(h, -jnp.inf, lax.max,
                                 (1, 1, ph, pw), (1, 1, ph, pw), 'VALID')

    h = mpool(jax.nn.relu(conv(x, w1, b1)), 2, 1)
    h = mpool(jax.nn.relu(conv(h, w2, b2)), 2, 1)
    h = mpool(jax.nn.relu(conv(h, w3, b3)), 2, 2)
    h = mpool(jax.nn.relu(conv(h, w4, b4)), 2, 1)
    h = conv(h, w5, b5)
    flat = h.reshape(h.shape[0], -1)
    z = jax.nn.relu(flat @ wfc.T + bfc)
    nrm = jnp.sqrt(jnp.sum(z * z, axis=1, keepdims=True))
    return z / jnp.maximum(nrm, 1e-12)


# --------------------------------- params ---------------------------------- #
def init_params(key):
    ks = iter(jax.random.split(key, 12))

    def conv_init(k, co, ci, kh, kw):
        n = kh * kw * co
        return jax.random.normal(k, (co, ci, kh, kw), jnp.float32) * np.sqrt(2.0 / n)

    w1 = conv_init(next(ks), 8, 1, 3, 2);   b1 = 0.01 * jax.random.normal(next(ks), (8,), jnp.float32)
    w2 = conv_init(next(ks), 16, 8, 3, 2);  b2 = 0.01 * jax.random.normal(next(ks), (16,), jnp.float32)
    w3 = conv_init(next(ks), 16, 16, 3, 2); b3 = 0.01 * jax.random.normal(next(ks), (16,), jnp.float32)
    w4 = conv_init(next(ks), 32, 16, 3, 1); b4 = 0.01 * jax.random.normal(next(ks), (32,), jnp.float32)
    w5 = conv_init(next(ks), 16, 32, 3, 1); b5 = 0.01 * jax.random.normal(next(ks), (16,), jnp.float32)
    wfc = 0.01 * jax.random.normal(next(ks), (128, 256), jnp.float32)
    bfc = 0.01 * jax.random.normal(next(ks), (128,), jnp.float32)
    return ((w1, b1), (w2, b2), (w3, b3), (w4, b4), (w5, b5), (wfc, bfc))


if __name__ == "__main__":
    key = jax.random.PRNGKey(0)
    pkey, xkey, xkey2 = jax.random.split(key, 3)
    params = init_params(pkey)

    # Small single-block case (B == N == 2).
    x = jax.random.normal(xkey, (2, 1, H_IN, W_IN), jnp.float32)
    out = jax.block_until_ready(wisig_forward_pallas(x, params))
    ref = jax.block_until_ready(wisig_forward_reference(x, params))
    assert out.shape == (2, FC_OUT)
    np.testing.assert_allclose(np.asarray(out), np.asarray(ref),
                               rtol=2e-3, atol=2e-3)

    # Batched multi-block case (N=20 -> blocks of 8, padded grid of 3).
    x2 = jax.random.normal(xkey2, (20, 1, H_IN, W_IN), jnp.float32)
    out2 = jax.block_until_ready(wisig_forward_pallas(x2, params, block_b=8))
    ref2 = jax.block_until_ready(wisig_forward_reference(x2, params))
    np.testing.assert_allclose(np.asarray(out2), np.asarray(ref2),
                               rtol=2e-3, atol=2e-3)

    print("KERNEL_OK")
</pallas_src>

<mosaic_0001>
module attributes {stable_mosaic.version = 11 : i64} {
  func.func @_wisig_kernel(%arg0: i32, %arg1: memref<32x32xf32, #tpu.memory_space<vmem>>, %arg2: memref<32x288xf32, #tpu.memory_space<vmem>>, %arg3: memref<1x256xf32, #tpu.memory_space<vmem>>, %arg4: memref<128x320xf32, #tpu.memory_space<vmem>>, %arg5: memref<1x256xf32, #tpu.memory_space<vmem>>, %arg6: memref<128x192xf32, #tpu.memory_space<vmem>>, %arg7: memref<1x128xf32, #tpu.memory_space<vmem>>, %arg8: memref<32x128xf32, #tpu.memory_space<vmem>>, %arg9: memref<1x64xf32, #tpu.memory_space<vmem>>, %arg10: memref<32x48xf32, #tpu.memory_space<vmem>>, %arg11: memref<1x16xf32, #tpu.memory_space<vmem>>, %arg12: memref<256x128xf32, #tpu.memory_space<vmem>>, %arg13: memref<1x128xf32, #tpu.memory_space<vmem>>, %arg14: memref<2x128xf32, #tpu.memory_space<vmem>>, %arg15: memref<32x16xf32, #tpu.memory_space<vmem>>) attributes {dimension_semantics = [#tpu.dimension_semantics<parallel>], iteration_bounds = array<i64: 1>, scalar_prefetch = 0 : i64, scratch_operands = 1 : i64, tpu.core_type = #tpu.core_type<tc>, window_params = [{transform_indices = @transform_0, window_bounds = array<i64: 32, 32>}, {pipeline_mode = #tpu.pipeline_mode<synchronous>, transform_indices = @transform_1, window_bounds = array<i64: 32, 288>}, {pipeline_mode = #tpu.pipeline_mode<synchronous>, transform_indices = @transform_2, window_bounds = array<i64: 1, 256>}, {pipeline_mode = #tpu.pipeline_mode<synchronous>, transform_indices = @transform_3, window_bounds = array<i64: 128, 320>}, {pipeline_mode = #tpu.pipeline_mode<synchronous>, transform_indices = @transform_4, window_bounds = array<i64: 1, 256>}, {pipeline_mode = #tpu.pipeline_mode<synchronous>, transform_indices = @transform_5, window_bounds = array<i64: 128, 192>}, {pipeline_mode = #tpu.pipeline_mode<synchronous>, transform_indices = @transform_6, window_bounds = array<i64: 1, 128>}, {pipeline_mode = #tpu.pipeline_mode<synchronous>, transform_indices = @transform_7, window_bounds = array<i64: 32, 128>}, {pipeline_mode = #tpu.pipeline_mode<synchronous>, transform_indices = @transform_8, window_bounds = array<i64: 1, 64>}, {pipeline_mode = #tpu.pipeline_mode<synchronous>, transform_indices = @transform_9, window_bounds = array<i64: 32, 48>}, {pipeline_mode = #tpu.pipeline_mode<synchronous>, transform_indices = @transform_10, window_bounds = array<i64: 1, 16>}, {pipeline_mode = #tpu.pipeline_mode<synchronous>, transform_indices = @transform_11, window_bounds = array<i64: 256, 128>}, {pipeline_mode = #tpu.pipeline_mode<synchronous>, transform_indices = @transform_12, window_bounds = array<i64: 1, 128>}, {transform_indices = @transform_13, window_bounds = array<i64: 2, 128>}]} {
    %c0 = arith.constant 0 : index
    %c0_0 = arith.constant 0 : index
    %0 = vector.load %arg1[%c0, %c0_0] : memref<32x32xf32, #tpu.memory_space<vmem>>, vector<32x32xf32>
    %c0_1 = arith.constant 0 : index
    %c0_2 = arith.constant 0 : index
    %1 = vector.load %arg2[%c0_1, %c0_2] : memref<32x288xf32, #tpu.memory_space<vmem>>, vector<32x288xf32>
    %cst = arith.constant dense<0.000000e+00> : vector<32x288xf32>
    %2 = tpu.matmul %0, %1, %cst {dimension_numbers = #tpu.dot_dimension_numbers<[1], [0], [0], [1], [0, 0, 1, 1], [], []>} : vector<32x32xf32>, vector<32x288xf32>, vector<32x288xf32> -> vector<32x288xf32>
    %3 = tpu.iota {dimensions = array<i32: 0>} : vector<32x16xi32>
    %c16_i32 = arith.constant 16 : i32
    %c0_i32 = arith.constant 0 : i32
    %4 = arith.cmpi eq, %c16_i32, %c0_i32 : i32
    %c1_i32 = arith.constant 1 : i32
    %5 = arith.select %4, %c1_i32, %c16_i32 : i32
    %6 = vector.broadcast %5 : i32 to vector<32x16xi32>
    %7 = arith.remsi %3, %6 : vector<32x16xi32>
    %c0_i32_3 = arith.constant 0 : i32
    %8 = vector.broadcast %c0_i32_3 : i32 to vector<32x16xi32>
    %9 = arith.cmpi ne, %7, %8 : vector<32x16xi32>
    %c0_i32_4 = arith.constant 0 : i32
    %10 = vector.broadcast %c0_i32_4 : i32 to vector<32x16xi32>
    %11 = arith.cmpi slt, %7, %10 : vector<32x16xi32>
    %c0_i32_5 = arith.constant 0 : i32
    %12 = arith.cmpi slt, %5, %c0_i32_5 : i32
    %13 = vector.broadcast %12 : i1 to vector<32x16xi1>
    %14 = vector.broadcast %13 : vector<32x16xi1> to vector<32x16xi1>
    %15 = arith.xori %11, %14 : vector<32x16xi1>
    %16 = arith.andi %15, %9 : vector<32x16xi1>
    %17 = vector.broadcast %5 : i32 to vector<32x16xi32>
    %18 = arith.addi %7, %17 : vector<32x16xi32>
    %19 = arith.select %16, %18, %7 : vector<32x16xi1>, vector<32x16xi32>
    %c0_i32_6 = arith.constant 0 : i32
    %20 = vector.broadcast %c0_i32_6 : i32 to vector<32x16xi32>
    %21 = arith.cmpi eq, %19, %20 : vector<32x16xi32>
    %22 = vector.extract_strided_slice %2 {offsets = [0, 0], sizes = [32, 16], strides = [1, 1]} : vector<32x288xf32> to vector<32x16xf32>
    %23 = vector.extract_strided_slice %22 {offsets = [31, 0], sizes = [1, 16], strides = [1, 1]} : vector<32x16xf32> to vector<1x16xf32>
    %24 = vector.extract_strided_slice %22 {offsets = [0, 0], sizes = [31, 16], strides = [1, 1]} : vector<32x16xf32> to vector<31x16xf32>
    %25 = tpu.concatenate %23, %24 in 0 : vector<1x16xf32>, vector<31x16xf32> -> vector<32x16xf32>
    %cst_7 = arith.constant 0.000000e+00 : f32
    %26 = vector.broadcast %cst_7 : f32 to vector<32x16xf32>
    %27 = arith.select %21, %26, %25 : vector<32x16xi1>, vector<32x16xf32>
    %c15_i32 = arith.constant 15 : i32
    %28 = vector.broadcast %c15_i32 : i32 to vector<32x16xi32>
    %29 = arith.cmpi eq, %19, %28 : vector<32x16xi32>
    %30 = vector.extract_strided_slice %2 {offsets = [0, 272], sizes = [32, 16], strides = [1, 1]} : vector<32x288xf32> to vector<32x16xf32>
    %31 = vector.extract_strided_slice %30 {offsets = [1, 0], sizes = [31, 16], strides = [1, 1]} : vector<32x16xf32> to vector<31x16xf32>
    %32 = vector.extract_strided_slice %30 {offsets = [0, 0], sizes = [1, 16], strides = [1, 1]} : vector<32x16xf32> to vector<1x16xf32>
    %33 = tpu.concatenate %31, %32 in 0 : vector<31x16xf32>, vector<1x16xf32> -> vector<32x16xf32>
    %cst_8 = arith.constant 0.000000e+00 : f32
    %34 = vector.broadcast %cst_8 : f32 to vector<32x16xf32>
    %35 = arith.select %29, %34, %33 : vector<32x16xi1>, vector<32x16xf32>
    %36 = vector.extract_strided_slice %2 {offsets = [0, 16], sizes = [32, 256], strides = [1, 1]} : vector<32x288xf32> to vector<32x256xf32>
    %37 = vector.extract_strided_slice %36 {offsets = [0, 0], sizes = [32, 16], strides = [1, 1]} : vector<32x256xf32> to vector<32x16xf32>
    %38 = arith.addf %37, %27 : vector<32x16xf32>
    %39 = vector.extract_strided_slice %36 {offsets = [0, 16], sizes = [32, 224], strides = [1, 1]} : vector<32x256xf32> to vector<32x224xf32>
    %40 = vector.extract_strided_slice %36 {offsets = [0, 240], sizes = [32, 16], strides = [1, 1]} : vector<32x256xf32> to vector<32x16xf32>
    %41 = arith.addf %40, %35 : vector<32x16xf32>
    %42 = tpu.concatenate %38, %39, %41 in 1 : vector<32x16xf32>, vector<32x224xf32>, vector<32x16xf32> -> vector<32x256xf32>
    %c0_9 = arith.constant 0 : index
    %c0_10 = arith.constant 0 : index
    %43 = vector.load %arg3[%c0_9, %c0_10] : memref<1x256xf32, #tpu.memory_space<vmem>>, vector<1x256xf32>
    %44 = vector.broadcast %43 : vector<1x256xf32> to vector<32x256xf32>
    %45 = arith.addf %42, %44 : vector<32x256xf32>
    %cst_11 = arith.constant 0.000000e+00 : f32
    %46 = vector.broadcast %cst_11 : f32 to vector<32x256xf32>
    %47 = arith.maximumf %45, %46 : vector<32x256xf32>
    %48 = vector.extract_strided_slice %47 {offsets = [0, 0], sizes = [32, 16], strides = [1, 1]} : vector<32x256xf32> to vector<32x16xf32>
    %49 = vector.extract_strided_slice %47 {offsets = [0, 16], sizes = [32, 16], strides = [1, 1]} : vector<32x256xf32> to vector<32x16xf32>
    %50 = arith.maximumf %48, %49 : vector<32x16xf32>
    %51 = vector.extract_strided_slice %47 {offsets = [0, 32], sizes = [32, 16], strides = [1, 1]} : vector<32x256xf32> to vector<32x16xf32>
    %52 = vector.extract_strided_slice %47 {offsets = [0, 48], sizes = [32, 16], strides = [1, 1]} : vector<32x256xf32> to vector<32x16xf32>
    %53 = arith.maximumf %51, %52 : vector<32x16xf32>
    %54 = vector.extract_strided_slice %47 {offsets = [0, 64], sizes = [32, 16], strides = [1, 1]} : vector<32x256xf32> to vector<32x16xf32>
    %55 = vector.extract_strided_slice %47 {offsets = [0, 80], sizes = [32, 16], strides = [1, 1]} : vector<32x256xf32> to vector<32x16xf32>
    %56 = arith.maximumf %54, %55 : vector<32x16xf32>
    %57 = vector.extract_strided_slice %47 {offsets = [0, 96], sizes = [32, 16], strides = [1, 1]} : vector<32x256xf32> to vector<32x16xf32>
    %58 = vector.extract_strided_slice %47 {offsets = [0, 112], sizes = [32, 16], strides = [1, 1]} : vector<32x256xf32> to vector<32x16xf32>
    %59 = arith.maximumf %57, %58 : vector<32x16xf32>
    %60 = vector.extract_strided_slice %47 {offsets = [0, 128], sizes = [32, 16], strides = [1, 1]} : vector<32x256xf32> to vector<32x16xf32>
    %61 = vector.extract_strided_slice %47 {offsets = [0, 144], sizes = [32, 16], strides = [1, 1]} : vector<32x256xf32> to vector<32x16xf32>
    %62 = arith.maximumf %60, %61 : vector<32x16xf32>
    %63 = vector.extract_strided_slice %47 {offsets = [0, 160], sizes = [32, 16], strides = [1, 1]} : vector<32x256xf32> to vector<32x16xf32>
    %64 = vector.extract_strided_slice %47 {offsets = [0, 176], sizes = [32, 16], strides = [1, 1]} : vector<32x256xf32> to vector<32x16xf32>
    %65 = arith.maximumf %63, %64 : vector<32x16xf32>
    %66 = vector.extract_strided_slice %47 {offsets = [0, 192], sizes = [32, 16], strides = [1, 1]} : vector<32x256xf32> to vector<32x16xf32>
    %67 = vector.extract_strided_slice %47 {offsets = [0, 208], sizes = [32, 16], strides = [1, 1]} : vector<32x256xf32> to vector<32x16xf32>
    %68 = arith.maximumf %66, %67 : vector<32x16xf32>
    %69 = vector.extract_strided_slice %47 {offsets = [0, 224], sizes = [32, 16], strides = [1, 1]} : vector<32x256xf32> to vector<32x16xf32>
    %70 = vector.extract_strided_slice %47 {offsets = [0, 240], sizes = [32, 16], strides = [1, 1]} : vector<32x256xf32> to vector<32x16xf32>
    %71 = arith.maximumf %69, %70 : vector<32x16xf32>
    %72 = tpu.concatenate %50, %53, %56, %59, %62, %65, %68, %71 in 1 : vector<32x16xf32>, vector<32x16xf32>, vector<32x16xf32>, vector<32x16xf32>, vector<32x16xf32>, vector<32x16xf32>, vector<32x16xf32>, vector<32x16xf32> -> vector<32x128xf32>
    %c0_12 = arith.constant 0 : index
    %c0_13 = arith.constant 0 : index
    %73 = vector.load %arg4[%c0_12, %c0_13] : memref<128x320xf32, #tpu.memory_space<vmem>>, vector<128x320xf32>
    %cst_14 = arith.constant dense<0.000000e+00> : vector<32x320xf32>
    %74 = tpu.matmul %72, %73, %cst_14 {dimension_numbers = #tpu.dot_dimension_numbers<[1], [0], [0], [1], [0, 0, 1, 1], [], []>} : vector<32x128xf32>, vector<128x320xf32>, vector<32x320xf32> -> vector<32x320xf32>
    %75 = tpu.iota {dimensions = array<i32: 0>} : vector<32x32xi32>
    %c16_i32_15 = arith.constant 16 : i32
    %c0_i32_16 = arith.constant 0 : i32
    %76 = arith.cmpi eq, %c16_i32_15, %c0_i32_16 : i32
    %c1_i32_17 = arith.constant 1 : i32
    %77 = arith.select %76, %c1_i32_17, %c16_i32_15 : i32
    %78 = vector.broadcast %77 : i32 to vector<32x32xi32>
    %79 = arith.remsi %75, %78 : vector<32x32xi32>
    %c0_i32_18 = arith.constant 0 : i32
    %80 = vector.broadcast %c0_i32_18 : i32 to vector<32x32xi32>
    %81 = arith.cmpi ne, %79, %80 : vector<32x32xi32>
    %c0_i32_19 = arith.constant 0 : i32
    %82 = vector.broadcast %c0_i32_19 : i32 to vector<32x32xi32>
    %83 = arith.cmpi slt, %79, %82 : vector<32x32xi32>
    %c0_i32_20 = arith.constant 0 : i32
    %84 = arith.cmpi slt, %77, %c0_i32_20 : i32
    %85 = vector.broadcast %84 : i1 to vector<32x32xi1>
    %86 = vector.broadcast %85 : vector<32x32xi1> to vector<32x32xi1>
    %87 = arith.xori %83, %86 : vector<32x32xi1>
    %88 = arith.andi %87, %81 : vector<32x32xi1>
    %89 = vector.broadcast %77 : i32 to vector<32x32xi32>
    %90 = arith.addi %79, %89 : vector<32x32xi32>
    %91 = arith.select %88, %90, %79 : vector<32x32xi1>, vector<32x32xi32>
    %c0_i32_21 = arith.constant 0 : i32
    %92 = vector.broadcast %c0_i32_21 : i32 to vector<32x32xi32>
    %93 = arith.cmpi eq, %91, %92 : vector<32x32xi32>
    %94 = vector.extract_strided_slice %74 {offsets = [0, 0], sizes = [32, 32], strides = [1, 1]} : vector<32x320xf32> to vector<32x32xf32>
    %95 = vector.extract_strided_slice %94 {offsets = [31, 0], sizes = [1, 32], strides = [1, 1]} : vector<32x32xf32> to vector<1x32xf32>
    %96 = vector.extract_strided_slice %94 {offsets = [0, 0], sizes = [31, 32], strides = [1, 1]} : vector<32x32xf32> to vector<31x32xf32>
    %97 = tpu.concatenate %95, %96 in 0 : vector<1x32xf32>, vector<31x32xf32> -> vector<32x32xf32>
    %cst_22 = arith.constant 0.000000e+00 : f32
    %98 = vector.broadcast %cst_22 : f32 to vector<32x32xf32>
    %99 = arith.select %93, %98, %97 : vector<32x32xi1>, vector<32x32xf32>
    %c15_i32_23 = arith.constant 15 : i32
    %100 = vector.broadcast %c15_i32_23 : i32 to vector<32x32xi32>
    %101 = arith.cmpi eq, %91, %100 : vector<32x32xi32>
    %102 = vector.extract_strided_slice %74 {offsets = [0, 288], sizes = [32, 32], strides = [1, 1]} : vector<32x320xf32> to vector<32x32xf32>
    %103 = vector.extract_strided_slice %102 {offsets = [1, 0], sizes = [31, 32], strides = [1, 1]} : vector<32x32xf32> to vector<31x32xf32>
    %104 = vector.extract_strided_slice %102 {offsets = [0, 0], sizes = [1, 32], strides = [1, 1]} : vector<32x32xf32> to vector<1x32xf32>
    %105 = tpu.concatenate %103, %104 in 0 : vector<31x32xf32>, vector<1x32xf32> -> vector<32x32xf32>
    %cst_24 = arith.constant 0.000000e+00 : f32
    %106 = vector.broadcast %cst_24 : f32 to vector<32x32xf32>
    %107 = arith.select %101, %106, %105 : vector<32x32xi1>, vector<32x32xf32>
    %108 = vector.extract_strided_slice %74 {offsets = [0, 32], sizes = [32, 256], strides = [1, 1]} : vector<32x320xf32> to vector<32x256xf32>
    %109 = vector.extract_strided_slice %108 {offsets = [0, 0], sizes = [32, 32], strides = [1, 1]} : vector<32x256xf32> to vector<32x32xf32>
    %110 = arith.addf %109, %99 : vector<32x32xf32>
    %111 = vector.extract_strided_slice %108 {offsets = [0, 32], sizes = [32, 192], strides = [1, 1]} : vector<32x256xf32> to vector<32x192xf32>
    %112 = vector.extract_strided_slice %108 {offsets = [0, 224], sizes = [32, 32], strides = [1, 1]} : vector<32x256xf32> to vector<32x32xf32>
    %113 = arith.addf %112, %107 : vector<32x32xf32>
    %114 = tpu.concatenate %110, %111, %113 in 1 : vector<32x32xf32>, vector<32x192xf32>, vector<32x32xf32> -> vector<32x256xf32>
    %c0_25 = arith.constant 0 : index
    %c0_26 = arith.constant 0 : index
    %115 = vector.load %arg5[%c0_25, %c0_26] : memref<1x256xf32, #tpu.memory_space<vmem>>, vector<1x256xf32>
    %116 = vector.broadcast %115 : vector<1x256xf32> to vector<32x256xf32>
    %117 = arith.addf %114, %116 : vector<32x256xf32>
    %cst_27 = arith.constant 0.000000e+00 : f32
    %118 = vector.broadcast %cst_27 : f32 to vector<32x256xf32>
    %119 = arith.maximumf %117, %118 : vector<32x256xf32>
    %120 = vector.extract_strided_slice %119 {offsets = [0, 0], sizes = [32, 32], strides = [1, 1]} : vector<32x256xf32> to vector<32x32xf32>
    %121 = vector.extract_strided_slice %119 {offsets = [0, 32], sizes = [32, 32], strides = [1, 1]} : vector<32x256xf32> to vector<32x32xf32>
    %122 = arith.maximumf %120, %121 : vector<32x32xf32>
    %123 = vector.extract_strided_slice %119 {offsets = [0, 64], sizes = [32, 32], strides = [1, 1]} : vector<32x256xf32> to vector<32x32xf32>
    %124 = vector.extract_strided_slice %119 {offsets = [0, 96], sizes = [32, 32], strides = [1, 1]} : vector<32x256xf32> to vector<32x32xf32>
    %125 = arith.maximumf %123, %124 : vector<32x32xf32>
    %126 = vector.extract_strided_slice %119 {offsets = [0, 128], sizes = [32, 32], strides = [1, 1]} : vector<32x256xf32> to vector<32x32xf32>
    %127 = vector.extract_strided_slice %119 {offsets = [0, 160], sizes = [32, 32], strides = [1, 1]} : vector<32x256xf32> to vector<32x32xf32>
    %128 = arith.maximumf %126, %127 : vector<32x32xf32>
    %129 = vector.extract_strided_slice %119 {offsets = [0, 192], sizes = [32, 32], strides = [1, 1]} : vector<32x256xf32> to vector<32x32xf32>
    %130 = vector.extract_strided_slice %119 {offsets = [0, 224], sizes = [32, 32], strides = [1, 1]} : vector<32x256xf32> to vector<32x32xf32>
    %131 = arith.maximumf %129, %130 : vector<32x32xf32>
    %132 = tpu.concatenate %122, %125, %128, %131 in 1 : vector<32x32xf32>, vector<32x32xf32>, vector<32x32xf32>, vector<32x32xf32> -> vector<32x128xf32>
    %c0_28 = arith.constant 0 : index
    %c0_29 = arith.constant 0 : index
    %133 = vector.load %arg6[%c0_28, %c0_29] : memref<128x192xf32, #tpu.memory_space<vmem>>, vector<128x192xf32>
    %cst_30 = arith.constant dense<0.000000e+00> : vector<32x192xf32>
    %134 = tpu.matmul %132, %133, %cst_30 {dimension_numbers = #tpu.dot_dimension_numbers<[1], [0], [0], [1], [0, 0, 1, 1], [], []>} : vector<32x128xf32>, vector<128x192xf32>, vector<32x192xf32> -> vector<32x192xf32>
    %135 = tpu.iota {dimensions = array<i32: 0>} : vector<32x32xi32>
    %c16_i32_31 = arith.constant 16 : i32
    %c0_i32_32 = arith.constant 0 : i32
    %136 = arith.cmpi eq, %c16_i32_31, %c0_i32_32 : i32
    %c1_i32_33 = arith.constant 1 : i32
    %137 = arith.select %136, %c1_i32_33, %c16_i32_31 : i32
    %138 = vector.broadcast %137 : i32 to vector<32x32xi32>
    %139 = arith.remsi %135, %138 : vector<32x32xi32>
    %c0_i32_34 = arith.constant 0 : i32
    %140 = vector.broadcast %c0_i32_34 : i32 to vector<32x32xi32>
    %141 = arith.cmpi ne, %139, %140 : vector<32x32xi32>
    %c0_i32_35 = arith.constant 0 : i32
    %142 = vector.broadcast %c0_i32_35 : i32 to vector<32x32xi32>
    %143 = arith.cmpi slt, %139, %142 : vector<32x32xi32>
    %c0_i32_36 = arith.constant 0 : i32
    %144 = arith.cmpi slt, %137, %c0_i32_36 : i32
    %145 = vector.broadcast %144 : i1 to vector<32x32xi1>
    %146 = vector.broadcast %145 : vector<32x32xi1> to vector<32x32xi1>
    %147 = arith.xori %143, %146 : vector<32x32xi1>
    %148 = arith.andi %147, %141 : vector<32x32xi1>
    %149 = vector.broadcast %137 : i32 to vector<32x32xi32>
    %150 = arith.addi %139, %149 : vector<32x32xi32>
    %151 = arith.select %148, %150, %139 : vector<32x32xi1>, vector<32x32xi32>
    %c0_i32_37 = arith.constant 0 : i32
    %152 = vector.broadcast %c0_i32_37 : i32 to vector<32x32xi32>
    %153 = arith.cmpi eq, %151, %152 : vector<32x32xi32>
    %154 = vector.extract_strided_slice %134 {offsets = [0, 0], sizes = [32, 32], strides = [1, 1]} : vector<32x192xf32> to vector<32x32xf32>
    %155 = vector.extract_strided_slice %154 {offsets = [31, 0], sizes = [1, 32], strides = [1, 1]} : vector<32x32xf32> to vector<1x32xf32>
    %156 = vector.extract_strided_slice %154 {offsets = [0, 0], sizes = [31, 32], strides = [1, 1]} : vector<32x32xf32> to vector<31x32xf32>
    %157 = tpu.concatenate %155, %156 in 0 : vector<1x32xf32>, vector<31x32xf32> -> vector<32x32xf32>
    %cst_38 = arith.constant 0.000000e+00 : f32
    %158 = vector.broadcast %cst_38 : f32 to vector<32x32xf32>
    %159 = arith.select %153, %158, %157 : vector<32x32xi1>, vector<32x32xf32>
    %c15_i32_39 = arith.constant 15 : i32
    %160 = vector.broadcast %c15_i32_39 : i32 to vector<32x32xi32>
    %161 = arith.cmpi eq, %151, %160 : vector<32x32xi32>
    %162 = vector.extract_strided_slice %134 {offsets = [0, 160], sizes = [32, 32], strides = [1, 1]} : vector<32x192xf32> to vector<32x32xf32>
    %163 = vector.extract_strided_slice %162 {offsets = [1, 0], sizes = [31, 32], strides = [1, 1]} : vector<32x32xf32> to vector<31x32xf32>
    %164 = vector.extract_strided_slice %162 {offsets = [0, 0], sizes = [1, 32], strides = [1, 1]} : vector<32x32xf32> to vector<1x32xf32>
    %165 = tpu.concatenate %163, %164 in 0 : vector<31x32xf32>, vector<1x32xf32> -> vector<32x32xf32>
    %cst_40 = arith.constant 0.000000e+00 : f32
    %166 = vector.broadcast %cst_40 : f32 to vector<32x32xf32>
    %167 = arith.select %161, %166, %165 : vector<32x32xi1>, vector<32x32xf32>
    %168 = vector.extract_strided_slice %134 {offsets = [0, 32], sizes = [32, 128], strides = [1, 1]} : vector<32x192xf32> to vector<32x128xf32>
    %169 = vector.extract_strided_slice %168 {offsets = [0, 0], sizes = [32, 32], strides = [1, 1]} : vector<32x128xf32> to vector<32x32xf32>
    %170 = arith.addf %169, %159 : vector<32x32xf32>
    %171 = vector.extract_strided_slice %168 {offsets = [0, 32], sizes = [32, 64], strides = [1, 1]} : vector<32x128xf32> to vector<32x64xf32>
    %172 = vector.extract_strided_slice %168 {offsets = [0, 96], sizes = [32, 32], strides = [1, 1]} : vector<32x128xf32> to vector<32x32xf32>
    %173 = arith.addf %172, %167 : vector<32x32xf32>
    %174 = tpu.concatenate %170, %171, %173 in 1 : vector<32x32xf32>, vector<32x64xf32>, vector<32x32xf32> -> vector<32x128xf32>
    %c0_41 = arith.constant 0 : index
    %c0_42 = arith.constant 0 : index
    %175 = vector.load %arg7[%c0_41, %c0_42] : memref<1x128xf32, #tpu.memory_space<vmem>>, vector<1x128xf32>
    %176 = vector.broadcast %175 : vector<1x128xf32> to vector<32x128xf32>
    %177 = arith.addf %174, %176 : vector<32x128xf32>
    %cst_43 = arith.constant 0.000000e+00 : f32
    %178 = vector.broadcast %cst_43 : f32 to vector<32x128xf32>
    %179 = arith.maximumf %177, %178 : vector<32x128xf32>
    %180 = vector.extract_strided_slice %179 {offsets = [0, 0], sizes = [32, 16], strides = [1, 1]} : vector<32x128xf32> to vector<32x16xf32>
    %181 = vector.extract_strided_slice %179 {offsets = [0, 16], sizes = [32, 16], strides = [1, 1]} : vector<32x128xf32> to vector<32x16xf32>
    %182 = vector.extract_strided_slice %179 {offsets = [0, 32], sizes = [32, 16], strides = [1, 1]} : vector<32x128xf32> to vector<32x16xf32>
    %183 = vector.extract_strided_slice %179 {offsets = [0, 48], sizes = [32, 16], strides = [1, 1]} : vector<32x128xf32> to vector<32x16xf32>
    %184 = arith.maximumf %180, %181 : vector<32x16xf32>
    %185 = arith.maximumf %182, %183 : vector<32x16xf32>
    %186 = arith.maximumf %184, %185 : vector<32x16xf32>
    %187 = vector.extract_strided_slice %179 {offsets = [0, 64], sizes = [32, 16], strides = [1, 1]} : vector<32x128xf32> to vector<32x16xf32>
    %188 = vector.extract_strided_slice %179 {offsets = [0, 80], sizes = [32, 16], strides = [1, 1]} : vector<32x128xf32> to vector<32x16xf32>
    %189 = vector.extract_strided_slice %179 {offsets = [0, 96], sizes = [32, 16], strides = [1, 1]} : vector<32x128xf32> to vector<32x16xf32>
    %190 = vector.extract_strided_slice %179 {offsets = [0, 112], sizes = [32, 16], strides = [1, 1]} : vector<32x128xf32> to vector<32x16xf32>
    %191 = arith.maximumf %187, %188 : vector<32x16xf32>
    %192 = arith.maximumf %189, %190 : vector<32x16xf32>
    %193 = arith.maximumf %191, %192 : vector<32x16xf32>
    %194 = tpu.concatenate %186, %193 in 1 : vector<32x16xf32>, vector<32x16xf32> -> vector<32x32xf32>
    %c0_44 = arith.constant 0 : index
    %c0_45 = arith.constant 0 : index
    %195 = vector.load %arg8[%c0_44, %c0_45] : memref<32x128xf32, #tpu.memory_space<vmem>>, vector<32x128xf32>
    %cst_46 = arith.constant dense<0.000000e+00> : vector<32x128xf32>
    %196 = tpu.matmul %194, %195, %cst_46 {dimension_numbers = #tpu.dot_dimension_numbers<[1], [0], [0], [1], [0, 0, 1, 1], [], []>} : vector<32x32xf32>, vector<32x128xf32>, vector<32x128xf32> -> vector<32x128xf32>
    %197 = tpu.iota {dimensions = array<i32: 0>} : vector<32x32xi32>
    %c16_i32_47 = arith.constant 16 : i32
    %c0_i32_48 = arith.constant 0 : i32
    %198 = arith.cmpi eq, %c16_i32_47, %c0_i32_48 : i32
    %c1_i32_49 = arith.constant 1 : i32
    %199 = arith.select %198, %c1_i32_49, %c16_i32_47 : i32
    %200 = vector.broadcast %199 : i32 to vector<32x32xi32>
    %201 = arith.remsi %197, %200 : vector<32x32xi32>
    %c0_i32_50 = arith.constant 0 : i32
    %202 = vector.broadcast %c0_i32_50 : i32 to vector<32x32xi32>
    %203 = arith.cmpi ne, %201, %202 : vector<32x32xi32>
    %c0_i32_51 = arith.constant 0 : i32
    %204 = vector.broadcast %c0_i32_51 : i32 to vector<32x32xi32>
    %205 = arith.cmpi slt, %201, %204 : vector<32x32xi32>
    %c0_i32_52 = arith.constant 0 : i32
    %206 = arith.cmpi slt, %199, %c0_i32_52 : i32
    %207 = vector.broadcast %206 : i1 to vector<32x32xi1>
    %208 = vector.broadcast %207 : vector<32x32xi1> to vector<32x32xi1>
    %209 = arith.xori %205, %208 : vector<32x32xi1>
    %210 = arith.andi %209, %203 : vector<32x32xi1>
    %211 = vector.broadcast %199 : i32 to vector<32x32xi32>
    %212 = arith.addi %201, %211 : vector<32x32xi32>
    %213 = arith.select %210, %212, %201 : vector<32x32xi1>, vector<32x32xi32>
    %c0_i32_53 = arith.constant 0 : i32
    %214 = vector.broadcast %c0_i32_53 : i32 to vector<32x32xi32>
    %215 = arith.cmpi eq, %213, %214 : vector<32x32xi32>
    %216 = vector.extract_strided_slice %196 {offsets = [0, 0], sizes = [32, 32], strides = [1, 1]} : vector<32x128xf32> to vector<32x32xf32>
    %217 = vector.extract_strided_slice %216 {offsets = [31, 0], sizes = [1, 32], strides = [1, 1]} : vector<32x32xf32> to vector<1x32xf32>
    %218 = vector.extract_strided_slice %216 {offsets = [0, 0], sizes = [31, 32], strides = [1, 1]} : vector<32x32xf32> to vector<31x32xf32>
    %219 = tpu.concatenate %217, %218 in 0 : vector<1x32xf32>, vector<31x32xf32> -> vector<32x32xf32>
    %cst_54 = arith.constant 0.000000e+00 : f32
    %220 = vector.broadcast %cst_54 : f32 to vector<32x32xf32>
    %221 = arith.select %215, %220, %219 : vector<32x32xi1>, vector<32x32xf32>
    %c15_i32_55 = arith.constant 15 : i32
    %222 = vector.broadcast %c15_i32_55 : i32 to vector<32x32xi32>
    %223 = arith.cmpi eq, %213, %222 : vector<32x32xi32>
    %224 = vector.extract_strided_slice %196 {offsets = [0, 96], sizes = [32, 32], strides = [1, 1]} : vector<32x128xf32> to vector<32x32xf32>
    %225 = vector.extract_strided_slice %224 {offsets = [1, 0], sizes = [31, 32], strides = [1, 1]} : vector<32x32xf32> to vector<31x32xf32>
    %226 = vector.extract_strided_slice %224 {offsets = [0, 0], sizes = [1, 32], strides = [1, 1]} : vector<32x32xf32> to vector<1x32xf32>
    %227 = tpu.concatenate %225, %226 in 0 : vector<31x32xf32>, vector<1x32xf32> -> vector<32x32xf32>
    %cst_56 = arith.constant 0.000000e+00 : f32
    %228 = vector.broadcast %cst_56 : f32 to vector<32x32xf32>
    %229 = arith.select %223, %228, %227 : vector<32x32xi1>, vector<32x32xf32>
    %230 = vector.extract_strided_slice %196 {offsets = [0, 32], sizes = [32, 64], strides = [1, 1]} : vector<32x128xf32> to vector<32x64xf32>
    %231 = vector.extract_strided_slice %230 {offsets = [0, 0], sizes = [32, 32], strides = [1, 1]} : vector<32x64xf32> to vector<32x32xf32>
    %232 = arith.addf %231, %221 : vector<32x32xf32>
    %233 = vector.extract_strided_slice %230 {offsets = [0, 32], sizes = [32, 32], strides = [1, 1]} : vector<32x64xf32> to vector<32x32xf32>
    %234 = arith.addf %233, %229 : vector<32x32xf32>
    %235 = tpu.concatenate %232, %234 in 1 : vector<32x32xf32>, vector<32x32xf32> -> vector<32x64xf32>
    %c0_57 = arith.constant 0 : index
    %c0_58 = arith.constant 0 : index
    %236 = vector.load %arg9[%c0_57, %c0_58] : memref<1x64xf32, #tpu.memory_space<vmem>>, vector<1x64xf32>
    %237 = vector.broadcast %236 : vector<1x64xf32> to vector<32x64xf32>
    %238 = arith.addf %235, %237 : vector<32x64xf32>
    %cst_59 = arith.constant 0.000000e+00 : f32
    %239 = vector.broadcast %cst_59 : f32 to vector<32x64xf32>
    %240 = arith.maximumf %238, %239 : vector<32x64xf32>
    %241 = vector.extract_strided_slice %240 {offsets = [0, 0], sizes = [32, 32], strides = [1, 1]} : vector<32x64xf32> to vector<32x32xf32>
    %242 = vector.extract_strided_slice %240 {offsets = [0, 32], sizes = [32, 32], strides = [1, 1]} : vector<32x64xf32> to vector<32x32xf32>
    %243 = arith.maximumf %241, %242 : vector<32x32xf32>
    %c0_60 = arith.constant 0 : index
    %c0_61 = arith.constant 0 : index
    %244 = vector.load %arg10[%c0_60, %c0_61] : memref<32x48xf32, #tpu.memory_space<vmem>>, vector<32x48xf32>
    %cst_62 = arith.constant dense<0.000000e+00> : vector<32x48xf32>
    %245 = tpu.matmul %243, %244, %cst_62 {dimension_numbers = #tpu.dot_dimension_numbers<[1], [0], [0], [1], [0, 0, 1, 1], [], []>} : vector<32x32xf32>, vector<32x48xf32>, vector<32x48xf32> -> vector<32x48xf32>
    %246 = tpu.iota {dimensions = array<i32: 0>} : vector<32x16xi32>
    %c16_i32_63 = arith.constant 16 : i32
    %c0_i32_64 = arith.constant 0 : i32
    %247 = arith.cmpi eq, %c16_i32_63, %c0_i32_64 : i32
    %c1_i32_65 = arith.constant 1 : i32
    %248 = arith.select %247, %c1_i32_65, %c16_i32_63 : i32
    %249 = vector.broadcast %248 : i32 to vector<32x16xi32>
    %250 = arith.remsi %246, %249 : vector<32x16xi32>
    %c0_i32_66 = arith.constant 0 : i32
    %251 = vector.broadcast %c0_i32_66 : i32 to vector<32x16xi32>
    %252 = arith.cmpi ne, %250, %251 : vector<32x16xi32>
    %c0_i32_67 = arith.constant 0 : i32
    %253 = vector.broadcast %c0_i32_67 : i32 to vector<32x16xi32>
    %254 = arith.cmpi slt, %250, %253 : vector<32x16xi32>
    %c0_i32_68 = arith.constant 0 : i32
    %255 = arith.cmpi slt, %248, %c0_i32_68 : i32
    %256 = vector.broadcast %255 : i1 to vector<32x16xi1>
    %257 = vector.broadcast %256 : vector<32x16xi1> to vector<32x16xi1>
    %258 = arith.xori %254, %257 : vector<32x16xi1>
    %259 = arith.andi %258, %252 : vector<32x16xi1>
    %260 = vector.broadcast %248 : i32 to vector<32x16xi32>
    %261 = arith.addi %250, %260 : vector<32x16xi32>
    %262 = arith.select %259, %261, %250 : vector<32x16xi1>, vector<32x16xi32>
    %c0_i32_69 = arith.constant 0 : i32
    %263 = vector.broadcast %c0_i32_69 : i32 to vector<32x16xi32>
    %264 = arith.cmpi eq, %262, %263 : vector<32x16xi32>
    %265 = vector.extract_strided_slice %245 {offsets = [0, 0], sizes = [32, 16], strides = [1, 1]} : vector<32x48xf32> to vector<32x16xf32>
    %266 = vector.extract_strided_slice %265 {offsets = [31, 0], sizes = [1, 16], strides = [1, 1]} : vector<32x16xf32> to vector<1x16xf32>
    %267 = vector.extract_strided_slice %265 {offsets = [0, 0], sizes = [31, 16], strides = [1, 1]} : vector<32x16xf32> to vector<31x16xf32>
    %268 = tpu.concatenate %266, %267 in 0 : vector<1x16xf32>, vector<31x16xf32> -> vector<32x16xf32>
    %cst_70 = arith.constant 0.000000e+00 : f32
    %269 = vector.broadcast %cst_70 : f32 to vector<32x16xf32>
    %270 = arith.select %264, %269, %268 : vector<32x16xi1>, vector<32x16xf32>
    %c15_i32_71 = arith.constant 15 : i32
    %271 = vector.broadcast %c15_i32_71 : i32 to vector<32x16xi32>
    %272 = arith.cmpi eq, %262, %271 : vector<32x16xi32>
    %273 = vector.extract_strided_slice %245 {offsets = [0, 32], sizes = [32, 16], strides = [1, 1]} : vector<32x48xf32> to vector<32x16xf32>
    %274 = vector.extract_strided_slice %273 {offsets = [1, 0], sizes = [31, 16], strides = [1, 1]} : vector<32x16xf32> to vector<31x16xf32>
    %275 = vector.extract_strided_slice %273 {offsets = [0, 0], sizes = [1, 16], strides = [1, 1]} : vector<32x16xf32> to vector<1x16xf32>
    %276 = tpu.concatenate %274, %275 in 0 : vector<31x16xf32>, vector<1x16xf32> -> vector<32x16xf32>
    %cst_72 = arith.constant 0.000000e+00 : f32
    %277 = vector.broadcast %cst_72 : f32 to vector<32x16xf32>
    %278 = arith.select %272, %277, %276 : vector<32x16xi1>, vector<32x16xf32>
    %279 = vector.extract_strided_slice %245 {offsets = [0, 16], sizes = [32, 16], strides = [1, 1]} : vector<32x48xf32> to vector<32x16xf32>
    %280 = arith.addf %279, %270 : vector<32x16xf32>
    %281 = arith.addf %280, %278 : vector<32x16xf32>
    %c0_73 = arith.constant 0 : index
    %c0_74 = arith.constant 0 : index
    %282 = vector.load %arg11[%c0_73, %c0_74] : memref<1x16xf32, #tpu.memory_space<vmem>>, vector<1x16xf32>
    %283 = vector.broadcast %282 : vector<1x16xf32> to vector<32x16xf32>
    %284 = arith.addf %281, %283 : vector<32x16xf32>
    %c0_75 = arith.constant 0 : index
    %c0_76 = arith.constant 0 : index
    %285 = vector.load %arg15[%c0_75, %c0_76] : memref<32x16xf32, #tpu.memory_space<vmem>>, vector<32x16xf32>
    tpu.vector_store %arg15[%c0_75, %c0_76], %284 {strides = array<i32>} : memref<32x16xf32, #tpu.memory_space<vmem>>, vector<32x16xf32>,
    %c0_77 = arith.constant 0 : index
    %c0_78 = arith.constant 0 : index
    %286 = tpu.strided_load %arg15[%c0_77, %c0_78] {strides = array<i32: 16, 1>} : memref<32x16xf32, #tpu.memory_space<vmem>>, vector<2x16xf32>
    %c1 = arith.constant 1 : index
    %c0_79 = arith.constant 0 : index
    %287 = tpu.strided_load %arg15[%c1, %c0_79] {strides = array<i32: 16, 1>} : memref<32x16xf32, #tpu.memory_space<vmem>>, vector<2x16xf32>
    %c2 = arith.constant 2 : index
    %c0_80 = arith.constant 0 : index
    %288 = tpu.strided_load %arg15[%c2, %c0_80] {strides = array<i32: 16, 1>} : memref<32x16xf32, #tpu.memory_space<vmem>>, vector<2x16xf32>
    %c3 = arith.constant 3 : index
    %c0_81 = arith.constant 0 : index
    %289 = tpu.strided_load %arg15[%c3, %c0_81] {strides = array<i32: 16, 1>} : memref<32x16xf32, #tpu.memory_space<vmem>>, vector<2x16xf32>
    %c4 = arith.constant 4 : index
    %c0_82 = arith.constant 0 : index
    %290 = tpu.strided_load %arg15[%c4, %c0_82] {strides = array<i32: 16, 1>} : memref<32x16xf32, #tpu.memory_space<vmem>>, vector<2x16xf32>
    %c5 = arith.constant 5 : index
    %c0_83 = arith.constant 0 : index
    %291 = tpu.strided_load %arg15[%c5, %c0_83] {strides = array<i32: 16, 1>} : memref<32x16xf32, #tpu.memory_space<vmem>>, vector<2x16xf32>
    %c6 = arith.constant 6 : index
    %c0_84 = arith.constant 0 : index
    %292 = tpu.strided_load %arg15[%c6, %c0_84] {strides = array<i32: 16, 1>} : memref<32x16xf32, #tpu.memory_space<vmem>>, vector<2x16xf32>
    %c7 = arith.constant 7 : index
    %c0_85 = arith.constant 0 : index
    %293 = tpu.strided_load %arg15[%c7, %c0_85] {strides = array<i32: 16, 1>} : memref<32x16xf32, #tpu.memory_space<vmem>>, vector<2x16xf32>
    %c8 = arith.constant 8 : index
    %c0_86 = arith.constant 0 : index
    %294 = tpu.strided_load %arg15[%c8, %c0_86] {strides = array<i32: 16, 1>} : memref<32x16xf32, #tpu.memory_space<vmem>>, vector<2x16xf32>
    %c9 = arith.constant 9 : index
    %c0_87 = arith.constant 0 : index
    %295 = tpu.strided_load %arg15[%c9, %c0_87] {strides = array<i32: 16, 1>} : memref<32x16xf32, #tpu.memory_space<vmem>>, vector<2x16xf32>
    %c10 = arith.constant 10 : index
    %c0_88 = arith.constant 0 : index
    %296 = tpu.strided_load %arg15[%c10, %c0_88] {strides = array<i32: 16, 1>} : memref<32x16xf32, #tpu.memory_space<vmem>>, vector<2x16xf32>
    %c11 = arith.constant 11 : index
    %c0_89 = arith.constant 0 : index
    %297 = tpu.strided_load %arg15[%c11, %c0_89] {strides = array<i32: 16, 1>} : memref<32x16xf32, #tpu.memory_space<vmem>>, vector<2x16xf32>
    %c12 = arith.constant 12 : index
    %c0_90 = arith.constant 0 : index
    %298 = tpu.strided_load %arg15[%c12, %c0_90] {strides = array<i32: 16, 1>} : memref<32x16xf32, #tpu.memory_space<vmem>>, vector<2x16xf32>
    %c13 = arith.constant 13 : index
    %c0_91 = arith.constant 0 : index
    %299 = tpu.strided_load %arg15[%c13, %c0_91] {strides = array<i32: 16, 1>} : memref<32x16xf32, #tpu.memory_space<vmem>>, vector<2x16xf32>
    %c14 = arith.constant 14 : index
    %c0_92 = arith.constant 0 : index
    %300 = tpu.strided_load %arg15[%c14, %c0_92] {strides = array<i32: 16, 1>} : memref<32x16xf32, #tpu.memory_space<vmem>>, vector<2x16xf32>
    %c15 = arith.constant 15 : index
    %c0_93 = arith.constant 0 : index
    %301 = tpu.strided_load %arg15[%c15, %c0_93] {strides = array<i32: 16, 1>} : memref<32x16xf32, #tpu.memory_space<vmem>>, vector<2x16xf32>
    %302 = tpu.concatenate %286, %287, %288, %289, %290, %291, %292, %293, %294, %295, %296, %297, %298, %299, %300, %301 in 1 : vector<2x16xf32>, vector<2x16xf32>, vector<2x16xf32>, vector<2x16xf32>, vector<2x16xf32>, vector<2x16xf32>, vector<2x16xf32>, vector<2x16xf32>, vector<2x16xf32>, vector<2x16xf32>, vector<2x16xf32>, vector<2x16xf32>, vector<2x16xf32>, vector<2x16xf32>, vector<2x16xf32>, vector<2x16xf32> -> vector<2x256xf32>
    %c0_94 = arith.constant 0 : index
    %c0_95 = arith.constant 0 : index
    %303 = vector.load %arg12[%c0_94, %c0_95] : memref<256x128xf32, #tpu.memory_space<vmem>>, vector<256x128xf32>
    %cst_96 = arith.constant dense<0.000000e+00> : vector<2x128xf32>
    %304 = tpu.matmul %302, %303, %cst_96 {dimension_numbers = #tpu.dot_dimension_numbers<[1], [0], [0], [1], [0, 0, 1, 1], [], []>} : vector<2x256xf32>, vector<256x128xf32>, vector<2x128xf32> -> vector<2x128xf32>
    %c0_97 = arith.constant 0 : index
    %c0_98 = arith.constant 0 : index
    %305 = vector.load %arg13[%c0_97, %c0_98] : memref<1x128xf32, #tpu.memory_space<vmem>>, vector<1x128xf32>
    %306 = vector.broadcast %305 : vector<1x128xf32> to vector<2x128xf32>
    %307 = arith.addf %304, %306 : vector<2x128xf32>
    %cst_99 = arith.constant 0.000000e+00 : f32
    %308 = vector.broadcast %cst_99 : f32 to vector<2x128xf32>
    %309 = arith.maximumf %307, %308 : vector<2x128xf32>
    %310 = arith.mulf %309, %309 : vector<2x128xf32>
    %cst_100 = arith.constant dense<0.000000e+00> : vector<2xf32>
    %311 = vector.multi_reduction <add>, %310, %cst_100 [1] : vector<2x128xf32> to vector<2xf32>
    %312 = vector.shape_cast %311 : vector<2xf32> to vector<2x1xf32>
    %cst_101 = arith.constant 1.000000e-24 : f32
    %313 = vector.broadcast %cst_101 : f32 to vector<2x1xf32>
    %314 = arith.maximumf %312, %313 : vector<2x1xf32>
    %315 = math.rsqrt %314 : vector<2x1xf32>
    %316 = vector.broadcast %315 : vector<2x1xf32> to vector<2x128xf32>
    %317 = arith.mulf %309, %316 : vector<2x128xf32>
    %c0_102 = arith.constant 0 : index
    %c0_103 = arith.constant 0 : index
    %318 = vector.load %arg14[%c0_102, %c0_103] : memref<2x128xf32, #tpu.memory_space<vmem>>, vector<2x128xf32>
    tpu.vector_store %arg14[%c0_102, %c0_103], %317 {strides = array<i32>} : memref<2x128xf32, #tpu.memory_space<vmem>>, vector<2x128xf32>,
    return
  }
  func.func @transform_0(%arg0: i32) -> (i32, i32) {
    %c0_i32 = arith.constant 0 : i32
    %c0_i32_0 = arith.constant 0 : i32
    return %arg0, %c0_i32 : i32, i32
  }
  func.func @transform_1(%arg0: i32) -> (i32, i32) {
    %c0_i32 = arith.constant 0 : i32
    %c0_i32_0 = arith.constant 0 : i32
    %c0_i32_1 = arith.constant 0 : i32
    return %c0_i32, %c0_i32_0 : i32, i32
  }
  func.func @transform_2(%arg0: i32) -> (i32, i32) {
    %c0_i32 = arith.constant 0 : i32
    %c0_i32_0 = arith.constant 0 : i32
    %c0_i32_1 = arith.constant 0 : i32
    return %c0_i32, %c0_i32_0 : i32, i32
  }
  func.func @transform_3(%arg0: i32) -> (i32, i32) {
    %c0_i32 = arith.constant 0 : i32
    %c0_i32_0 = arith.constant 0 : i32
    %c0_i32_1 = arith.constant 0 : i32
    return %c0_i32, %c0_i32_0 : i32, i32
  }
  func.func @transform_4(%arg0: i32) -> (i32, i32) {
    %c0_i32 = arith.constant 0 : i32
    %c0_i32_0 = arith.constant 0 : i32
    %c0_i32_1 = arith.constant 0 : i32
    return %c0_i32, %c0_i32_0 : i32, i32
  }
  func.func @transform_5(%arg0: i32) -> (i32, i32) {
    %c0_i32 = arith.constant 0 : i32
    %c0_i32_0 = arith.constant 0 : i32
    %c0_i32_1 = arith.constant 0 : i32
    return %c0_i32, %c0_i32_0 : i32, i32
  }
  func.func @transform_6(%arg0: i32) -> (i32, i32) {
    %c0_i32 = arith.constant 0 : i32
    %c0_i32_0 = arith.constant 0 : i32
    %c0_i32_1 = arith.constant 0 : i32
    return %c0_i32, %c0_i32_0 : i32, i32
  }
  func.func @transform_7(%arg0: i32) -> (i32, i32) {
    %c0_i32 = arith.constant 0 : i32
    %c0_i32_0 = arith.constant 0 : i32
    %c0_i32_1 = arith.constant 0 : i32
    return %c0_i32, %c0_i32_0 : i32, i32
  }
  func.func @transform_8(%arg0: i32) -> (i32, i32) {
    %c0_i32 = arith.constant 0 : i32
    %c0_i32_0 = arith.constant 0 : i32
    %c0_i32_1 = arith.constant 0 : i32
    return %c0_i32, %c0_i32_0 : i32, i32
  }
  func.func @transform_9(%arg0: i32) -> (i32, i32) {
    %c0_i32 = arith.constant 0 : i32
    %c0_i32_0 = arith.constant 0 : i32
    %c0_i32_1 = arith.constant 0 : i32
    return %c0_i32, %c0_i32_0 : i32, i32
  }
  func.func @transform_10(%arg0: i32) -> (i32, i32) {
    %c0_i32 = arith.constant 0 : i32
    %c0_i32_0 = arith.constant 0 : i32
    %c0_i32_1 = arith.constant 0 : i32
    return %c0_i32, %c0_i32_0 : i32, i32
  }
  func.func @transform_11(%arg0: i32) -> (i32, i32) {
    %c0_i32 = arith.constant 0 : i32
    %c0_i32_0 = arith.constant 0 : i32
    %c0_i32_1 = arith.constant 0 : i32
    return %c0_i32, %c0_i32_0 : i32, i32
  }
  func.func @transform_12(%arg0: i32) -> (i32, i32) {
    %c0_i32 = arith.constant 0 : i32
    %c0_i32_0 = arith.constant 0 : i32
    %c0_i32_1 = arith.constant 0 : i32
    return %c0_i32, %c0_i32_0 : i32, i32
  }
  func.func @transform_13(%arg0: i32) -> (i32, i32) {
    %c0_i32 = arith.constant 0 : i32
    %c0_i32_0 = arith.constant 0 : i32
    return %arg0, %c0_i32 : i32, i32
  }
}

</mosaic_0001>

<llo_original>
// kernel: tpu_custom_call.1
$region0: #{tpu_custom_call.1}
  #allocation0 [shape = 'u32[]', space=smem, size = 0x4, offset = 0x4, fixed_abs, tag = 'smem constant byte address 0x4 - core index']
  #allocation1 [shape = 'u32[144,128]{1,0:T(1,128)}', space=vmem, size = 0x12000, scoped, tag = 'internal scratch']
  #allocation2 [shape = 'f32[32,16]{1,0:T(8,128)}', space=vmem, size = 0x4000, scoped, tag = 'scratch operand']
  %s0 = inlined_call_operand.vmem [shape: f32[32,32], index: 0, kind: input, shape index: {}]
  %s1 = inlined_call_operand.vmem [shape: f32[32,288], index: 1, kind: input, shape index: {}]
  %s2 = inlined_call_operand.vmem [shape: f32[1,256], index: 2, kind: input, shape index: {}]
  %s3 = inlined_call_operand.vmem [shape: f32[128,320], index: 3, kind: input, shape index: {}]
  %s4 = inlined_call_operand.vmem [shape: f32[1,256], index: 4, kind: input, shape index: {}]
  %s5 = inlined_call_operand.vmem [shape: f32[128,192], index: 5, kind: input, shape index: {}]
  %s6 = inlined_call_operand.vmem [shape: f32[1,128], index: 6, kind: input, shape index: {}]
  %s7 = inlined_call_operand.vmem [shape: f32[32,128], index: 7, kind: input, shape index: {}]
  %s8 = inlined_call_operand.vmem [shape: f32[1,64], index: 8, kind: input, shape index: {}]
  %s9 = inlined_call_operand.vmem [shape: f32[32,48], index: 9, kind: input, shape index: {}]
  %s10 = inlined_call_operand.vmem [shape: f32[1,16], index: 10, kind: input, shape index: {}]
  %s11 = inlined_call_operand.vmem [shape: f32[256,128], index: 11, kind: input, shape index: {}]
  %s12 = inlined_call_operand.vmem [shape: f32[1,128], index: 12, kind: input, shape index: {}]
  %s13 = inlined_call_operand.hbm [shape: f32[2,128], index: 13, kind: output, shape index: {}]
  %s14 = sld [smem:[#allocation0]]
  $region62: #{tpu_custom_call.1} parent=0
    _
  %s16 = ssub.s32 1, %s14
  %s17 = scalar_select 0, %s16, %s14
  $region1: #{tpu_custom_call.1} parent=0
    #allocation3 [shape = 'u8[1024]{0}', space=vmem, size = 0x400, scoped, tag = 'output window, operand 0, single buffered']
    #allocation4 [shape = 's32[1]{0}', space=sflag, size = 0x4, scoped, tag = 'scoped memory for tpu_custom_call.1']
    %18 = vsyncpa [#allocation4], 0
    // Predicated region
    $region2: #{tpu_custom_call.1} parent=1 // pred_check
      _
    $region3: #{tpu_custom_call.1} parent=1 // pred_check_branch
      %20 = sbr.rel (0) target = $region5
    $region4: #{tpu_custom_call.1} parent=1 // pred_region
      _
    $region5: #{tpu_custom_call.1} parent=1 // pred_fallthru
      _
    // Predicated region
    $region6: #{tpu_custom_call.1} parent=1 // pred_check
      _
    $region7: #{tpu_custom_call.1} parent=1 // pred_check_branch
      %22 = sbr.rel (0) target = $region9
    $region8: #{tpu_custom_call.1} parent=1 // pred_region
      _
    $region9: #{tpu_custom_call.1} parent=1 // pred_fallthru
      _
    // Predicated region
    $region10: #{tpu_custom_call.1} parent=1 // pred_check
      _
    $region11: #{tpu_custom_call.1} parent=1 // pred_check_branch
      %24 = sbr.rel (0) target = $region13
    $region12: #{tpu_custom_call.1} parent=1 // pred_region
      _
    $region13: #{tpu_custom_call.1} parent=1 // pred_fallthru
      _
    // Predicated region
    $region14: #{tpu_custom_call.1} parent=1 // pred_check
      _
    $region15: #{tpu_custom_call.1} parent=1 // pred_check_branch
      %26 = sbr.rel (0) target = $region17
    $region16: #{tpu_custom_call.1} parent=1 // pred_region
      _
    $region17: #{tpu_custom_call.1} parent=1 // pred_fallthru
      _
    // Predicated region
    $region18: #{tpu_custom_call.1} parent=1 // pred_check
      _
    $region19: #{tpu_custom_call.1} parent=1 // pred_check_branch
      %28 = sbr.rel (0) target = $region21
    $region20: #{tpu_custom_call.1} parent=1 // pred_region
      _
    $region21: #{tpu_custom_call.1} parent=1 // pred_fallthru
      _
    // Predicated region
    $region22: #{tpu_custom_call.1} parent=1 // pred_check
      _
    $region23: #{tpu_custom_call.1} parent=1 // pred_check_branch
      %30 = sbr.rel (0) target = $region25
    $region24: #{tpu_custom_call.1} parent=1 // pred_region
      _
    $region25: #{tpu_custom_call.1} parent=1 // pred_fallthru
      _
    // Predicated region
    $region26: #{tpu_custom_call.1} parent=1 // pred_check
      _
    $region27: #{tpu_custom_call.1} parent=1 // pred_check_branch
      %32 = sbr.rel (0) target = $region29
    $region28: #{tpu_custom_call.1} parent=1 // pred_region
      _
    $region29: #{tpu_custom_call.1} parent=1 // pred_fallthru
      _
    // Predicated region
    $region30: #{tpu_custom_call.1} parent=1 // pred_check
      _
    $region31: #{tpu_custom_call.1} parent=1 // pred_check_branch
      %34 = sbr.rel (0) target = $region33
    $region32: #{tpu_custom_call.1} parent=1 // pred_region
      _
    $region33: #{tpu_custom_call.1} parent=1 // pred_fallthru
      _
    // Predicated region
    $region34: #{tpu_custom_call.1} parent=1 // pred_check
      _
    $region35: #{tpu_custom_call.1} parent=1 // pred_check_branch
      %36 = sbr.rel (0) target = $region37
    $region36: #{tpu_custom_call.1} parent=1 // pred_region
      _
    $region37: #{tpu_custom_call.1} parent=1 // pred_fallthru
      _
    // Predicated region
    $region38: #{tpu_custom_call.1} parent=1 // pred_check
      _
    $region39: #{tpu_custom_call.1} parent=1 // pred_check_branch
      %38 = sbr.rel (0) target = $region41
    $region40: #{tpu_custom_call.1} parent=1 // pred_region
      _
    $region41: #{tpu_custom_call.1} parent=1 // pred_fallthru
      _
    // Predicated region
    $region42: #{tpu_custom_call.1} parent=1 // pred_check
      _
    $region43: #{tpu_custom_call.1} parent=1 // pred_check_branch
      %40 = sbr.rel (0) target = $region45
    $region44: #{tpu_custom_call.1} parent=1 // pred_region
      _
    $region45: #{tpu_custom_call.1} parent=1 // pred_fallthru
      _
    // Predicated region
    $region46: #{tpu_custom_call.1} parent=1 // pred_check
      _
    $region47: #{tpu_custom_call.1} parent=1 // pred_check_branch
      %42 = sbr.rel (0) target = $region49
    $region48: #{tpu_custom_call.1} parent=1 // pred_region
      _
    $region49: #{tpu_custom_call.1} parent=1 // pred_fallthru
      _
    // Predicated region
    $region50: #{tpu_custom_call.1} parent=1 // pred_check
      _
    $region51: #{tpu_custom_call.1} parent=1 // pred_check_branch
      %44 = sbr.rel (0) target = $region53
    $region52: #{tpu_custom_call.1} parent=1 // pred_region
      _
    $region53: #{tpu_custom_call.1} parent=1 // pred_fallthru
      _
    %v45 = vld [vmem:[%s0] sm:$0xff]
    %v46 = vld [vmem:[%s0 + $0x8] sm:$0xff]
    %v47 = vld [vmem:[%s0 + $0x10] sm:$0xff]
    %v48 = vld [vmem:[%s0 + $0x18] sm:$0xff]
    %v49 = vld [vmem:[%s1] sm:$0xff]
    %v50 = vld [vmem:[%s1 + $0x8] sm:$0xff]
    %v51 = vld [vmem:[%s1 + $0x10] sm:$0xff]
    %v52 = vld [vmem:[%s1 + $0x18] sm:$0xff]
    %v53 = vld [vmem:[%s1 + $0x20] sm:$0xff]
    %v54 = vld [vmem:[%s1 + $0x28] sm:$0xff]
    %v55 = vld [vmem:[%s1 + $0x30] sm:$0xff]
    %v56 = vld [vmem:[%s1 + $0x38] sm:$0xff]
    %v57 = vld [vmem:[%s1 + $0x40] sm:$0xff]
    %v58 = vld [vmem:[%s1 + $0x48] sm:$0xff]
    %v59 = vld [vmem:[%s1 + $0x50] sm:$0xff]
    %v60 = vld [vmem:[%s1 + $0x58] sm:$0xff]
    %vm61 = vcmask 261120
    %v63 = vsel %vm61, %v45, 0
    %v66 = vsel %vm61, %v46, 0
    %v69 = vsel %vm61, %v47, 0
    %v72 = vsel %vm61, %v48, 0
    %74 = vmatprep.subr.mxu0 %v50
    %75 = vmatpush1.msra.mxu0 %v49
    %76 = vmatprep.subr.mxu0 %v53
    %77 = vmatpush1.msra.mxu0 %v52
    %78 = vmatprep.subr.mxu0 %v56
    %79 = vmatpush1.msra.mxu0 %v55
    %80 = vmatprep.subr.mxu0 %v59
    %81 = vmatpush1.msra.mxu0 %v58
    %82 = vmatprep.subr.mxu0 0.0
    %83 = vmatpush1.msra.mxu0 0.0
    %84 = vmatprep.subr.mxu0 0.0
    %85 = vmatpush1.msra.mxu0 0.0
    %86 = vmatprep.subr.mxu0 0.0
    %87 = vmatpush1.msra.mxu0 0.0
    %88 = vmatprep.subr.mxu0 0.0
    %89 = vmatpush1.msra.mxu0 0.0
    %90 = vmatprep.subr.mxu0 0.0
    %91 = vmatpush1.msra.mxu0 0.0
    %92 = vmatprep.subr.mxu0 0.0
    %93 = vmatpush1.msra.mxu0 0.0
    %94 = vmatprep.subr.mxu0 0.0
    %95 = vmatpush1.msra.mxu0 0.0
    %96 = vmatprep.subr.mxu0 0.0
    %97 = vmatpush1.msra.mxu0 0.0
    %98 = vmatprep.subr.mxu0 0.0
    %99 = vmatpush1.msra.mxu0 0.0
    %100 = vmatprep.subr.mxu0 0.0
    %101 = vmatpush1.msra.mxu0 0.0
    %102 = vmatprep.subr.mxu0 0.0
    %103 = vmatpush1.msra.mxu0 0.0
    %104 = vmatprep.subr.mxu0 0.0
    %105 = vmatpush1.msra.mxu0 0.0
    %106 = vmatprep.subr.mxu0 0.0
    %107 = vmatpush1.msra.mxu0 0.0
    %108 = vmatprep.subr.mxu0 0.0
    %109 = vmatpush1.msra.mxu0 0.0
    %110 = vmatprep.subr.mxu0 0.0
    %111 = vmatpush1.msra.mxu0 0.0
    %112 = vmatprep.subr.mxu0 0.0
    %113 = vmatpush1.msra.mxu0 0.0
    %114 = vmatprep.subr.mxu0 0.0
    %115 = vmatpush1.msra.mxu0 0.0
    %116 = vmatprep.subr.mxu0 0.0
    %117 = vmatpush1.msra.mxu0 0.0
    %118 = vmatprep.subr.mxu0 0.0
    %119 = vmatpush1.msra.mxu0 0.0
    %120 = vmatprep.subr.mxu0 0.0
    %121 = vmatpush1.msra.mxu0 0.0
    %122 = vmatprep.subr.mxu0 0.0
    %123 = vmatpush1.msra.mxu0 0.0
    %124 = vmatprep.subr.mxu0 0.0
    %125 = vmatpush1.msra.mxu0 0.0
    %126 = vmatprep.subr.mxu0 0.0
    %127 = vmatpush1.msra.mxu0 0.0
    %128 = vmatprep.subr.mxu0 0.0
    %129 = vmatpush1.msra.mxu0 0.0
    %130 = vmatprep.subr.mxu0 0.0
    %131 = vmatpush1.msra.mxu0 0.0
    %132 = vmatprep.subr.mxu0 0.0
    %133 = vmatpush1.msra.mxu0 0.0
    %134 = vmatprep.subr.mxu0 0.0
    %135 = vmatpush1.msra.mxu0 0.0
    %136 = vmatprep.subr.mxu0 0.0
    %137 = vmatpush1.msra.mxu0 0.0
    %138 = vmatprep.mubr.f32.mxu0 0.0
    %139 = vmatmul.mubr.f32.gmra.mrb[0].mxu0 %v63
    %v140 = vpop.f32.mrb[0].mxu0
    %v141 = vadd.f32 0.0, %v140
    %v142 = vpop.f32.mrb[0].mxu0
    %v143 = vadd.f32 0.0, %v142
    %144 = vmatprep.mubr.f32.mxu0 0.0
    %145 = vmatmul.mubr.f32.gmra.mrb[0].mxu0 %v66
    %v146 = vpop.f32.mrb[0].mxu0
    %v147 = vadd.f32 0.0, %v146
    %v148 = vpop.f32.mrb[0].mxu0
    %v149 = vadd.f32 0.0, %v148
    %150 = vmatprep.mubr.f32.mxu0 0.0
    %151 = vmatmul.mubr.f32.gmra.mrb[0].mxu0 %v69
    %v152 = vpop.f32.mrb[0].mxu0
    %v153 = vadd.f32 0.0, %v152
    %v154 = vpop.f32.mrb[0].mxu0
    %v155 = vadd.f32 0.0, %v154
    %156 = vmatprep.mubr.f32.mxu0 0.0
    %157 = vmatmul.mubr.f32.gmra.mrb[0].mxu0 %v72
    %v158 = vpop.f32.mrb[0].mxu0
    %v159 = vadd.f32 0.0, %v158
    %v160 = vpop.f32.mrb[0].mxu0
    %v161 = vadd.f32 0.0, %v160
    %162 = vdwg.mxu0
    %163 = vmatprep.subr.mxu0 0.0
    %164 = vmatpush1.msra.mxu0 %v51
    %165 = vmatprep.subr.mxu0 0.0
    %166 = vmatpush1.msra.mxu0 %v54
    %167 = vmatprep.subr.mxu0 0.0
    %168 = vmatpush1.msra.mxu0 %v57
    %169 = vmatprep.subr.mxu0 0.0
    %170 = vmatpush1.msra.mxu0 %v60
    %171 = vmatprep.subr.mxu0 0.0
    %172 = vmatpush1.msra.mxu0 0.0
    %173 = vmatprep.subr.mxu0 0.0
    %174 = vmatpush1.msra.mxu0 0.0
    %175 = vmatprep.subr.mxu0 0.0
    %176 = vmatpush1.msra.mxu0 0.0
    %177 = vmatprep.subr.mxu0 0.0
    %178 = vmatpush1.msra.mxu0 0.0
    %179 = vmatprep.subr.mxu0 0.0
    %180 = vmatpush1.msra.mxu0 0.0
    %181 = vmatprep.subr.mxu0 0.0
    %182 = vmatpush1.msra.mxu0 0.0
    %183 = vmatprep.subr.mxu0 0.0
    %184 = vmatpush1.msra.mxu0 0.0
    %185 = vmatprep.subr.mxu0 0.0
    %186 = vmatpush1.msra.mxu0 0.0
    %187 = vmatprep.subr.mxu0 0.0
    %188 = vmatpush1.msra.mxu0 0.0
    %189 = vmatprep.subr.mxu0 0.0
    %190 = vmatpush1.msra.mxu0 0.0
    %191 = vmatprep.subr.mxu0 0.0
    %192 = vmatpush1.msra.mxu0 0.0
    %193 = vmatprep.subr.mxu0 0.0
    %194 = vmatpush1.msra.mxu0 0.0
    %195 = vmatprep.subr.mxu0 0.0
    %196 = vmatpush1.msra.mxu0 0.0
    %197 = vmatprep.subr.mxu0 0.0
    %198 = vmatpush1.msra.mxu0 0.0
    %199 = vmatprep.subr.mxu0 0.0
    %200 = vmatpush1.msra.mxu0 0.0
    %201 = vmatprep.subr.mxu0 0.0
    %202 = vmatpush1.msra.mxu0 0.0
    %203 = vmatprep.subr.mxu0 0.0
    %204 = vmatpush1.msra.mxu0 0.0
    %205 = vmatprep.subr.mxu0 0.0
    %206 = vmatpush1.msra.mxu0 0.0
    %207 = vmatprep.subr.mxu0 0.0
    %208 = vmatpush1.msra.mxu0 0.0
    %209 = vmatprep.subr.mxu0 0.0
    %210 = vmatpush1.msra.mxu0 0.0
    %211 = vmatprep.subr.mxu0 0.0
    %212 = vmatpush1.msra.mxu0 0.0
    %213 = vmatprep.subr.mxu0 0.0
    %214 = vmatpush1.msra.mxu0 0.0
    %215 = vmatprep.subr.mxu0 0.0
    %216 = vmatpush1.msra.mxu0 0.0
    %217 = vmatprep.subr.mxu0 0.0
    %218 = vmatpush1.msra.mxu0 0.0
    %219 = vmatprep.subr.mxu0 0.0
    %220 = vmatpush1.msra.mxu0 0.0
    %221 = vmatprep.subr.mxu0 0.0
    %222 = vmatpush1.msra.mxu0 0.0
    %223 = vmatprep.subr.mxu0 0.0
    %224 = vmatpush1.msra.mxu0 0.0
    %225 = vmatprep.subr.mxu0 0.0
    %226 = vmatpush1.msra.mxu0 0.0
    %227 = vmatprep.mubr.f32.mxu0 0.0
    %228 = vmatmul.mubr.f32.gmra.mrb[0].mxu0 %v63
    %v229 = vpop.f32.mrb[0].mxu0
    %v230 = vadd.f32 0.0, %v229
    %v231 = vpop.f32.mrb[0].mxu0
    %232 = vmatprep.mubr.f32.mxu0 0.0
    %233 = vmatmul.mubr.f32.gmra.mrb[0].mxu0 %v66
    %v234 = vpop.f32.mrb[0].mxu0
    %v235 = vadd.f32 0.0, %v234
    %v236 = vpop.f32.mrb[0].mxu0
    %237 = vmatprep.mubr.f32.mxu0 0.0
    %238 = vmatmul.mubr.f32.gmra.mrb[0].mxu0 %v69
    %v239 = vpop.f32.mrb[0].mxu0
    %v240 = vadd.f32 0.0, %v239
    %v241 = vpop.f32.mrb[0].mxu0
    %242 = vmatprep.mubr.f32.mxu0 0.0
    %243 = vmatmul.mubr.f32.gmra.mrb[0].mxu0 %v72
    %v244 = vpop.f32.mrb[0].mxu0
    %v245 = vadd.f32 0.0, %v244
    %v246 = vpop.f32.mrb[0].mxu0
    %247 = vdwg.mxu0
    %v248 = vlaneseq
    %v249 = vshrl.u32 %v248, 7
    %v250 = vadd.s32 %v249, 8
    %v251 = vadd.s32 %v249, 16
    %v252 = vadd.s32 %v249, 24
    %vm253 = vcmp.lt.s32.totalorder %v249, 0
    %v254 = vsub.s32 0, %v249
    %v255 = vsel %vm253, %v254, %v249
    %v256 = vshrl.u32 %v255, 4
    %v257 = vand.u32 %v255, 15
    %v258 = vsub.s32 0, %v257
    %v259 = vsel %vm253, %v258, %v257
    %vm260 = vcmp.lt.s32.totalorder %v250, 0
    %v261 = vsub.s32 0, %v250
    %v262 = vsel %vm260, %v261, %v250
    %v263 = vshrl.u32 %v262, 4
    %v264 = vand.u32 %v262, 15
    %v265 = vsub.s32 0, %v264
    %v266 = vsel %vm260, %v265, %v264
    %vm267 = vcmp.lt.s32.totalorder %v251, 0
    %v268 = vsub.s32 0, %v251
    %v269 = vsel %vm267, %v268, %v251
    %v270 = vshrl.u32 %v269, 4
    %v271 = vand.u32 %v269, 15
    %v272 = vsub.s32 0, %v271
    %v273 = vsel %vm267, %v272, %v271
    %vm274 = vcmp.lt.s32.totalorder %v252, 0
    %v275 = vsub.s32 0, %v252
    %v276 = vsel %vm274, %v275, %v252
    %v277 = vshrl.u32 %v276, 4
    %v278 = vand.u32 %v276, 15
    %v279 = vsub.s32 0, %v278
    %v280 = vsel %vm274, %v279, %v278
    %vm281 = vcmp.ne.s32.totalorder %v259, 0
    %vm282 = vcmp.ne.s32.totalorder %v266, 0
    %vm283 = vcmp.ne.s32.totalorder %v273, 0
    %vm284 = vcmp.ne.s32.totalorder %v280, 0
    %vm285 = vcmp.lt.s32.totalorder %v259, 0
    %vm286 = vcmp.lt.s32.totalorder %v266, 0
    %vm287 = vcmp.lt.s32.totalorder %v273, 0
    %vm288 = vcmp.lt.s32.totalorder %v280, 0
    %vm289 = vmand %vm285, %vm281
    %vm290 = vmand %vm286, %vm282
    %vm291 = vmand %vm287, %vm283
    %vm292 = vmand %vm288, %vm284
    %v293 = vadd.s32 %v259, 16
    %v294 = vadd.s32 %v266, 16
    %v295 = vadd.s32 %v273, 16
    %v296 = vadd.s32 %v280, 16
    %v297 = vsel %vm289, %v293, %v259
    %v298 = vsel %vm290, %v294, %v266
    %v299 = vsel %vm291, %v295, %v273
    %v300 = vsel %vm292, %v296, %v280
    %vm301 = vcmp.eq.s32.totalorder %v297, 0
    %vm302 = vcmp.eq.s32.totalorder %v298, 0
    %vm303 = vcmp.eq.s32.totalorder %v299, 0
    %vm304 = vcmp.eq.s32.totalorder %v300, 0
    %v306 = vrot.slane %v159, 7
    %vm311 = vcmask 1040384
    %v312 = vrot.slane %v141, 7
    %v313 = vrot.slane %v147, 7
    %v314 = vsel %vm311, %v312, %v313
    %v315 = vrot.slane %v153, 7
    %v316 = vsel %vm311, %v313, %v315
    %v317 = vsel %vm311, %v315, %v306
    %v322 = vsel %vm311, %v306, %v312
    %v323 = vsel %vm301, 0.0, %v322
    %v324 = vsel %vm302, 0.0, %v314
    %v325 = vsel %vm303, 0.0, %v316
    %v326 = vsel %vm304, 0.0, %v317
    %vm327 = vcmp.eq.s32.totalorder %v297, 15
    %vm328 = vcmp.eq.s32.totalorder %v298, 15
    %vm329 = vcmp.eq.s32.totalorder %v299, 15
    %vm330 = vcmp.eq.s32.totalorder %v300, 15
    %vm335 = vcmask 1046528
    %v336 = vrot.slane %v230, 1
    %v337 = vrot.slane %v235, 1
    %v338 = vsel %vm335, %v336, %v337
    %v339 = vrot.slane %v240, 1
    %v340 = vsel %vm335, %v337, %v339
    %v341 = vrot.slane %v245, 1
    %v342 = vsel %vm335, %v339, %v341
    %v348 = vsel %vm335, %v341, %v336
    %v349 = vsel %vm327, 0.0, %v338
    %v350 = vsel %vm328, 0.0, %v340
    %v351 = vsel %vm329, 0.0, %v342
    %v352 = vsel %vm330, 0.0, %v348
    %357 = vrot.lane.b32.xlu0 %v323, 16
    %v358 = vpop.permute.xlu0 %357
    %359 = vrot.lane.b32.xlu0 %v324, 16
    %v360 = vpop.permute.xlu0 %359
    %361 = vrot.lane.b32.xlu0 %v325, 16
    %v362 = vpop.permute.xlu0 %361
    %363 = vrot.lane.b32.xlu0 %v326, 16
    %v364 = vpop.permute.xlu0 %363
    %v369 = vadd.f32 %v141, %v358
    %v370 = vadd.f32 %v147, %v360
    %v371 = vadd.f32 %v153, %v362
    %v372 = vadd.f32 %v159, %v364
    %377 = vrot.lane.b32.xlu0 %v349, 112
    %v378 = vpop.permute.xlu0 %377
    %379 = vrot.lane.b32.xlu0 %v350, 112
    %v380 = vpop.permute.xlu0 %379
    %381 = vrot.lane.b32.xlu0 %v351, 112
    %v382 = vpop.permute.xlu0 %381
    %383 = vrot.lane.b32.xlu0 %v352, 112
    %v384 = vpop.permute.xlu0 %383
    %v389 = vadd.f32 %v230, %v378
    %v390 = vadd.f32 %v235, %v380
    %v391 = vadd.f32 %v240, %v382
    %v392 = vadd.f32 %v245, %v384
    %397 = vrot.lane.b32.xlu0 %v369, 112
    %v398 = vpop.permute.xlu0 %397
    %399 = vrot.lane.b32.xlu0 %v370, 112
    %v400 = vpop.permute.xlu0 %399
    %401 = vrot.lane.b32.xlu0 %v371, 112
    %v402 = vpop.permute.xlu0 %401
    %403 = vrot.lane.b32.xlu0 %v372, 112
    %v404 = vpop.permute.xlu0 %403
    %413 = vrot.lane.b32.xlu0 %v141, 112
    %v414 = vpop.permute.xlu0 %413
    %415 = vrot.lane.b32.xlu0 %v143, 112
    %v416 = vpop.permute.xlu0 %415
    %417 = vrot.lane.b32.xlu0 %v147, 112
    %v418 = vpop.permute.xlu0 %417
    %419 = vrot.lane.b32.xlu0 %v149, 112
    %v420 = vpop.permute.xlu0 %419
    %421 = vrot.lane.b32.xlu0 %v153, 112
    %v422 = vpop.permute.xlu0 %421
    %423 = vrot.lane.b32.xlu0 %v155, 112
    %v424 = vpop.permute.xlu0 %423
    %425 = vrot.lane.b32.xlu0 %v159, 112
    %v426 = vpop.permute.xlu0 %425
    %427 = vrot.lane.b32.xlu0 %v161, 112
    %v428 = vpop.permute.xlu0 %427
    %vm429 = vcmask 916480
    %v430 = vsel %vm429, %v414, %v416
    %v431 = vsel %vm429, %v418, %v420
    %v432 = vsel %vm429, %v422, %v424
    %v433 = vsel %vm429, %v426, %v428
    %446 = vrot.lane.b32.xlu0 %v389, 112
    %v447 = vpop.permute.xlu0 %446
    %448 = vrot.lane.b32.xlu0 %v390, 112
    %v449 = vpop.permute.xlu0 %448
    %450 = vrot.lane.b32.xlu0 %v391, 112
    %v451 = vpop.permute.xlu0 %450
    %452 = vrot.lane.b32.xlu0 %v392, 112
    %v453 = vpop.permute.xlu0 %452
    %vm458 = vcmask 130048
    %v459 = vsel %vm458, %v398, %v430
    %v460 = vsel %vm458, %v400, %v431
    %v461 = vsel %vm458, %v402, %v432
    %v462 = vsel %vm458, %v404, %v433
    %v463 = vsel %vm429, %v416, %v447
    %v464 = vsel %vm429, %v420, %v449
    %v465 = vsel %vm429, %v424, %v451
    %v466 = vsel %vm429, %v428, %v453
    %v467 = vld [vmem:[%s2] sm:$0x3]
    %v469 = vlaneseq
    %v470 = vshrl.u32 %v469, 7
    %v471 = vsub.s32 0, %v470
    %v472 = vrot.slane %v467, %v471
    %v473 = vlaneseq
    %v474 = vshrl.u32 %v473, 7
    %v475 = vsub.s32 1, %v474
    %v476 = vrot.slane %v467, %v475
    %v479 = vadd.f32 %v459, %v472
    %v480 = vadd.f32 %v463, %v476
    %v481 = vadd.f32 %v460, %v472
    %v482 = vadd.f32 %v464, %v476
    %v483 = vadd.f32 %v461, %v472
    %v484 = vadd.f32 %v465, %v476
    %v485 = vadd.f32 %v462, %v472
    %v486 = vadd.f32 %v466, %v476
    %v487 = vmax.f32 %v479, 0.0
    %v488 = vmax.f32 %v480, 0.0
    %v489 = vmax.f32 %v481, 0.0
    %v490 = vmax.f32 %v482, 0.0
    %v491 = vmax.f32 %v483, 0.0
    %v492 = vmax.f32 %v484, 0.0
    %v493 = vmax.f32 %v485, 0.0
    %v494 = vmax.f32 %v486, 0.0
    %499 = vrot.lane.b32.xlu0 %v487, 112
    %v500 = vpop.permute.xlu0 %499
    %501 = vrot.lane.b32.xlu0 %v489, 112
    %v502 = vpop.permute.xlu0 %501
    %503 = vrot.lane.b32.xlu0 %v491, 112
    %v504 = vpop.permute.xlu0 %503
    %505 = vrot.lane.b32.xlu0 %v493, 112
    %v506 = vpop.permute.xlu0 %505
    %v511 = vmax.f32 %v487, %v500
    %v512 = vmax.f32 %v489, %v502
    %v513 = vmax.f32 %v491, %v504
    %v514 = vmax.f32 %v493, %v506
    %519 = vrot.lane.b32.xlu0 %v488, 112
    %v520 = vpop.permute.xlu0 %519
    %521 = vrot.lane.b32.xlu0 %v490, 112
    %v522 = vpop.permute.xlu0 %521
    %523 = vrot.lane.b32.xlu0 %v492, 112
    %v524 = vpop.permute.xlu0 %523
    %525 = vrot.lane.b32.xlu0 %v494, 112
    %v526 = vpop.permute.xlu0 %525
    %v531 = vmax.f32 %v488, %v520
    %v532 = vmax.f32 %v490, %v522
    %v533 = vmax.f32 %v492, %v524
    %v534 = vmax.f32 %v494, %v526
    %539 = vrot.lane.b32.xlu0 %v511, 112
    %v540 = vpop.permute.xlu0 %539
    %541 = vrot.lane.b32.xlu0 %v512, 112
    %v542 = vpop.permute.xlu0 %541
    %543 = vrot.lane.b32.xlu0 %v513, 112
    %v544 = vpop.permute.xlu0 %543
    %545 = vrot.lane.b32.xlu0 %v514, 112
    %v546 = vpop.permute.xlu0 %545
    %551 = vrot.lane.b32.xlu0 %v511, 96
    %v552 = vpop.permute.xlu0 %551
    %553 = vrot.lane.b32.xlu0 %v512, 96
    %v554 = vpop.permute.xlu0 %553
    %555 = vrot.lane.b32.xlu0 %v513, 96
    %v556 = vpop.permute.xlu0 %555
    %557 = vrot.lane.b32.xlu0 %v514, 96
    %v558 = vpop.permute.xlu0 %557
    %563 = vrot.lane.b32.xlu0 %v511, 80
    %v564 = vpop.permute.xlu0 %563
    %565 = vrot.lane.b32.xlu0 %v512, 80
    %v566 = vpop.permute.xlu0 %565
    %567 = vrot.lane.b32.xlu0 %v513, 80
    %v568 = vpop.permute.xlu0 %567
    %569 = vrot.lane.b32.xlu0 %v514, 80
    %v570 = vpop.permute.xlu0 %569
    %579 = vrot.lane.b32.xlu0 %v531, 64
    %v580 = vpop.permute.xlu0 %579
    %581 = vrot.lane.b32.xlu0 %v532, 64
    %v582 = vpop.permute.xlu0 %581
    %583 = vrot.lane.b32.xlu0 %v533, 64
    %v584 = vpop.permute.xlu0 %583
    %585 = vrot.lane.b32.xlu0 %v534, 64
    %v586 = vpop.permute.xlu0 %585
    %591 = vrot.lane.b32.xlu0 %v531, 48
    %v592 = vpop.permute.xlu0 %591
    %593 = vrot.lane.b32.xlu0 %v532, 48
    %v594 = vpop.permute.xlu0 %593
    %595 = vrot.lane.b32.xlu0 %v533, 48
    %v596 = vpop.permute.xlu0 %595
    %597 = vrot.lane.b32.xlu0 %v534, 48
    %v598 = vpop.permute.xlu0 %597
    %603 = vrot.lane.b32.xlu0 %v531, 32
    %v604 = vpop.permute.xlu0 %603
    %605 = vrot.lane.b32.xlu0 %v532, 32
    %v606 = vpop.permute.xlu0 %605
    %607 = vrot.lane.b32.xlu0 %v533, 32
    %v608 = vpop.permute.xlu0 %607
    %609 = vrot.lane.b32.xlu0 %v534, 32
    %v610 = vpop.permute.xlu0 %609
    %615 = vrot.lane.b32.xlu0 %v531, 16
    %v616 = vpop.permute.xlu0 %615
    %617 = vrot.lane.b32.xlu0 %v532, 16
    %v618 = vpop.permute.xlu0 %617
    %619 = vrot.lane.b32.xlu0 %v533, 16
    %v620 = vpop.permute.xlu0 %619
    %621 = vrot.lane.b32.xlu0 %v534, 16
    %v622 = vpop.permute.xlu0 %621
    %v627 = vsel %vm458, %v511, %v540
    %v628 = vsel %vm458, %v512, %v542
    %v629 = vsel %vm458, %v513, %v544
    %v630 = vsel %vm458, %v514, %v546
    %v631 = vsel %vm61, %v627, %v552
    %v632 = vsel %vm61, %v628, %v554
    %v633 = vsel %vm61, %v629, %v556
    %v634 = vsel %vm61, %v630, %v558
    %vm635 = vcmask 392192
    %v636 = vsel %vm635, %v631, %v564
    %v637 = vsel %vm635, %v632, %v566
    %v638 = vsel %vm635, %v633, %v568
    %v639 = vsel %vm635, %v634, %v570
    %vm640 = vcmask 523264
    %v641 = vsel %vm640, %v636, %v580
    %v642 = vsel %vm640, %v637, %v582
    %v643 = vsel %vm640, %v638, %v584
    %v644 = vsel %vm640, %v639, %v586
    %vm645 = vcmask 654336
    %v646 = vsel %vm645, %v641, %v592
    %v647 = vsel %vm645, %v642, %v594
    %v648 = vsel %vm645, %v643, %v596
    %v649 = vsel %vm645, %v644, %v598
    %vm650 = vcmask 785408
    %v651 = vsel %vm650, %v646, %v604
    %v652 = vsel %vm650, %v647, %v606
    %v653 = vsel %vm650, %v648, %v608
    %v654 = vsel %vm650, %v649, %v610
    %v655 = vsel %vm429, %v651, %v616
    %v656 = vsel %vm429, %v652, %v618
    %v657 = vsel %vm429, %v653, %v620
    %v658 = vsel %vm429, %v654, %v622
    %v659 = vld [vmem:[%s3] sm:$0xff]
    %v660 = vld [vmem:[%s3 + $0x8] sm:$0xff]
    %v661 = vld [vmem:[%s3 + $0x10] sm:$0xff]
    %v662 = vld [vmem:[%s3 + $0x18] sm:$0xff]
    %v663 = vld [vmem:[%s3 + $0x20] sm:$0xff]
    %v664 = vld [vmem:[%s3 + $0x28] sm:$0xff]
    %v665 = vld [vmem:[%s3 + $0x30] sm:$0xff]
    %v666 = vld [vmem:[%s3 + $0x38] sm:$0xff]
    %v667 = vld [vmem:[%s3 + $0x40] sm:$0xff]
    %v668 = vld [vmem:[%s3 + $0x48] sm:$0xff]
    %v669 = vld [vmem:[%s3 + $0x50] sm:$0xff]
    %v670 = vld [vmem:[%s3 + $0x58] sm:$0xff]
    %v671 = vld [vmem:[%s3 + $0x60] sm:$0xff]
    %v672 = vld [vmem:[%s3 + $0x68] sm:$0xff]
    %v673 = vld [vmem:[%s3 + $0x70] sm:$0xff]
    %v674 = vld [vmem:[%s3 + $0x78] sm:$0xff]
    %v675 = vld [vmem:[%s3 + $0x80] sm:$0xff]
    %v676 = vld [vmem:[%s3 + $0x88] sm:$0xff]
    %v677 = vld [vmem:[%s3 + $0x90] sm:$0xff]
    %v678 = vld [vmem:[%s3 + $0x98] sm:$0xff]
    %v679 = vld [vmem:[%s3 + $0xa0] sm:$0xff]
    %v680 = vld [vmem:[%s3 + $0xa8] sm:$0xff]
    %v681 = vld [vmem:[%s3 + $0xb0] sm:$0xff]
    %v682 = vld [vmem:[%s3 + $0xb8] sm:$0xff]
    %v683 = vld [vmem:[%s3 + $0xc0] sm:$0xff]
    %v684 = vld [vmem:[%s3 + $0xc8] sm:$0xff]
    %v685 = vld [vmem:[%s3 + $0xd0] sm:$0xff]
    %v686 = vld [vmem:[%s3 + $0xd8] sm:$0xff]
    %v687 = vld [vmem:[%s3 + $0xe0] sm:$0xff]
    %v688 = vld [vmem:[%s3 + $0xe8] sm:$0xff]
    %v689 = vld [vmem:[%s3 + $0xf0] sm:$0xff]
    %v690 = vld [vmem:[%s3 + $0xf8] sm:$0xff]
    %v691 = vld [vmem:[%s3 + $0x100] sm:$0xff]
    %v692 = vld [vmem:[%s3 + $0x108] sm:$0xff]
    %v693 = vld [vmem:[%s3 + $0x110] sm:$0xff]
    %v694 = vld [vmem:[%s3 + $0x118] sm:$0xff]
    %v695 = vld [vmem:[%s3 + $0x120] sm:$0xff]
    %v696 = vld [vmem:[%s3 + $0x128] sm:$0xff]
    %v697 = vld [vmem:[%s3 + $0x130] sm:$0xff]
    %v698 = vld [vmem:[%s3 + $0x138] sm:$0xff]
    %v699 = vld [vmem:[%s3 + $0x140] sm:$0xff]
    %v700 = vld [vmem:[%s3 + $0x148] sm:$0xff]
    %v701 = vld [vmem:[%s3 + $0x150] sm:$0xff]
    %v702 = vld [vmem:[%s3 + $0x158] sm:$0xff]
    %v703 = vld [vmem:[%s3 + $0x160] sm:$0xff]
    %v704 = vld [vmem:[%s3 + $0x168] sm:$0xff]
    %v705 = vld [vmem:[%s3 + $0x170] sm:$0xff]
    %v706 = vld [vmem:[%s3 + $0x178] sm:$0xff]
    %707 = vmatprep.subr.mxu0 %v660
    %708 = vmatpush1.msra.mxu0 %v659
    %709 = vmatprep.subr.mxu0 %v663
    %710 = vmatpush1.msra.mxu0 %v662
    %711 = vmatprep.subr.mxu0 %v666
    %712 = vmatpush1.msra.mxu0 %v665
    %713 = vmatprep.subr.mxu0 %v669
    %714 = vmatpush1.msra.mxu0 %v668
    %715 = vmatprep.subr.mxu0 %v672
    %716 = vmatpush1.msra.mxu0 %v671
    %717 = vmatprep.subr.mxu0 %v675
    %718 = vmatpush1.msra.mxu0 %v674
    %719 = vmatprep.subr.mxu0 %v678
    %720 = vmatpush1.msra.mxu0 %v677
    %721 = vmatprep.subr.mxu0 %v681
    %722 = vmatpush1.msra.mxu0 %v680
    %723 = vmatprep.subr.mxu0 %v684
    %724 = vmatpush1.msra.mxu0 %v683
    %725 = vmatprep.subr.mxu0 %v687
    %726 = vmatpush1.msra.mxu0 %v686
    %727 = vmatprep.subr.mxu0 %v690
    %728 = vmatpush1.msra.mxu0 %v689
    %729 = vmatprep.subr.mxu0 %v693
    %730 = vmatpush1.msra.mxu0 %v692
    %731 = vmatprep.subr.mxu0 %v696
    %732 = vmatpush1.msra.mxu0 %v695
    %733 = vmatprep.subr.mxu0 %v699
    %734 = vmatpush1.msra.mxu0 %v698
    %735 = vmatprep.subr.mxu0 %v702
    %736 = vmatpush1.msra.mxu0 %v701
    %737 = vmatprep.subr.mxu0 %v705
    %738 = vmatpush1.msra.mxu0 %v704
    %739 = vmatprep.subr.mxu0 0.0
    %740 = vmatpush1.msra.mxu0 0.0
    %741 = vmatprep.subr.mxu0 0.0
    %742 = vmatpush1.msra.mxu0 0.0
    %743 = vmatprep.subr.mxu0 0.0
    %744 = vmatpush1.msra.mxu0 0.0
    %745 = vmatprep.subr.mxu0 0.0
    %746 = vmatpush1.msra.mxu0 0.0
    %747 = vmatprep.subr.mxu0 0.0
    %748 = vmatpush1.msra.mxu0 0.0
    %749 = vmatprep.subr.mxu0 0.0
    %750 = vmatpush1.msra.mxu0 0.0
    %751 = vmatprep.subr.mxu0 0.0
    %752 = vmatpush1.msra.mxu0 0.0
    %753 = vmatprep.subr.mxu0 0.0
    %754 = vmatpush1.msra.mxu0 0.0
    %755 = vmatprep.subr.mxu0 0.0
    %756 = vmatpush1.msra.mxu0 0.0
    %757 = vmatprep.subr.mxu0 0.0
    %758 = vmatpush1.msra.mxu0 0.0
    %759 = vmatprep.subr.mxu0 0.0
    %760 = vmatpush1.msra.mxu0 0.0
    %761 = vmatprep.subr.mxu0 0.0
    %762 = vmatpush1.msra.mxu0 0.0
    %763 = vmatprep.subr.mxu0 0.0
    %764 = vmatpush1.msra.mxu0 0.0
    %765 = vmatprep.subr.mxu0 0.0
    %766 = vmatpush1.msra.mxu0 0.0
    %767 = vmatprep.subr.mxu0 0.0
    %768 = vmatpush1.msra.mxu0 0.0
    %769 = vmatprep.subr.mxu0 0.0
    %770 = vmatpush1.msra.mxu0 0.0
    %771 = vmatprep.mubr.f32.mxu0 0.0
    %772 = vmatmul.mubr.f32.gmra.mrb[0].mxu0 %v655
    %v773 = vpop.f32.mrb[0].mxu0
    %v774 = vadd.f32 0.0, %v773
    %v775 = vpop.f32.mrb[0].mxu0
    %v776 = vadd.f32 0.0, %v775
    %777 = vmatprep.mubr.f32.mxu0 0.0
    %778 = vmatmul.mubr.f32.gmra.mrb[0].mxu0 %v656
    %v779 = vpop.f32.mrb[0].mxu0
    %v780 = vadd.f32 0.0, %v779
    %v781 = vpop.f32.mrb[0].mxu0
    %v782 = vadd.f32 0.0, %v781
    %783 = vmatprep.mubr.f32.mxu0 0.0
    %784 = vmatmul.mubr.f32.gmra.mrb[0].mxu0 %v657
    %v785 = vpop.f32.mrb[0].mxu0
    %v786 = vadd.f32 0.0, %v785
    %v787 = vpop.f32.mrb[0].mxu0
    %v788 = vadd.f32 0.0, %v787
    %789 = vmatprep.mubr.f32.mxu0 0.0
    %790 = vmatmul.mubr.f32.gmra.mrb[0].mxu0 %v658
    %v791 = vpop.f32.mrb[0].mxu0
    %v792 = vadd.f32 0.0, %v791
    %v793 = vpop.f32.mrb[0].mxu0
    %v794 = vadd.f32 0.0, %v793
    %795 = vdwg.mxu0
    %796 = vmatprep.subr.mxu0 0.0
    %797 = vmatpush1.msra.mxu0 %v661
    %798 = vmatprep.subr.mxu0 0.0
    %799 = vmatpush1.msra.mxu0 %v664
    %800 = vmatprep.subr.mxu0 0.0
    %801 = vmatpush1.msra.mxu0 %v667
    %802 = vmatprep.subr.mxu0 0.0
    %803 = vmatpush1.msra.mxu0 %v670
    %804 = vmatprep.subr.mxu0 0.0
    %805 = vmatpush1.msra.mxu0 %v673
    %806 = vmatprep.subr.mxu0 0.0
    %807 = vmatpush1.msra.mxu0 %v676
    %808 = vmatprep.subr.mxu0 0.0
    %809 = vmatpush1.msra.mxu0 %v679
    %810 = vmatprep.subr.mxu0 0.0
    %811 = vmatpush1.msra.mxu0 %v682
    %812 = vmatprep.subr.mxu0 0.0
    %813 = vmatpush1.msra.mxu0 %v685
    %814 = vmatprep.subr.mxu0 0.0
    %815 = vmatpush1.msra.mxu0 %v688
    %816 = vmatprep.subr.mxu0 0.0
    %817 = vmatpush1.msra.mxu0 %v691
    %818 = vmatprep.subr.mxu0 0.0
    %819 = vmatpush1.msra.mxu0 %v694
    %820 = vmatprep.subr.mxu0 0.0
    %821 = vmatpush1.msra.mxu0 %v697
    %822 = vmatprep.subr.mxu0 0.0
    %823 = vmatpush1.msra.mxu0 %v700
    %824 = vmatprep.subr.mxu0 0.0
    %825 = vmatpush1.msra.mxu0 %v703
    %826 = vmatprep.subr.mxu0 0.0
    %827 = vmatpush1.msra.mxu0 %v706
    %828 = vmatprep.subr.mxu0 0.0
    %829 = vmatpush1.msra.mxu0 0.0
    %830 = vmatprep.subr.mxu0 0.0
    %831 = vmatpush1.msra.mxu0 0.0
    %832 = vmatprep.subr.mxu0 0.0
    %833 = vmatpush1.msra.mxu0 0.0
    %834 = vmatprep.subr.mxu0 0.0
    %835 = vmatpush1.msra.mxu0 0.0
    %836 = vmatprep.subr.mxu0 0.0
    %837 = vmatpush1.msra.mxu0 0.0
    %838 = vmatprep.subr.mxu0 0.0
    %839 = vmatpush1.msra.mxu0 0.0
    %840 = vmatprep.subr.mxu0 0.0
    %841 = vmatpush1.msra.mxu0 0.0
    %842 = vmatprep.subr.mxu0 0.0
    %843 = vmatpush1.msra.mxu0 0.0
    %844 = vmatprep.subr.mxu0 0.0
    %845 = vmatpush1.msra.mxu0 0.0
    %846 = vmatprep.subr.mxu0 0.0
    %847 = vmatpush1.msra.mxu0 0.0
    %848 = vmatprep.subr.mxu0 0.0
    %849 = vmatpush1.msra.mxu0 0.0
    %850 = vmatprep.subr.mxu0 0.0
    %851 = vmatpush1.msra.mxu0 0.0
    %852 = vmatprep.subr.mxu0 0.0
    %853 = vmatpush1.msra.mxu0 0.0
    %854 = vmatprep.subr.mxu0 0.0
    %855 = vmatpush1.msra.mxu0 0.0
    %856 = vmatprep.subr.mxu0 0.0
    %857 = vmatpush1.msra.mxu0 0.0
    %858 = vmatprep.subr.mxu0 0.0
    %859 = vmatpush1.msra.mxu0 0.0
    %860 = vmatprep.mubr.f32.mxu0 0.0
    %861 = vmatmul.mubr.f32.gmra.mrb[0].mxu0 %v655
    %v862 = vpop.f32.mrb[0].mxu0
    %v863 = vadd.f32 0.0, %v862
    %v864 = vpop.f32.mrb[0].mxu0
    %865 = vmatprep.mubr.f32.mxu0 0.0
    %866 = vmatmul.mubr.f32.gmra.mrb[0].mxu0 %v656
    %v867 = vpop.f32.mrb[0].mxu0
    %v868 = vadd.f32 0.0, %v867
    %v869 = vpop.f32.mrb[0].mxu0
    %870 = vmatprep.mubr.f32.mxu0 0.0
    %871 = vmatmul.mubr.f32.gmra.mrb[0].mxu0 %v657
    %v872 = vpop.f32.mrb[0].mxu0
    %v873 = vadd.f32 0.0, %v872
    %v874 = vpop.f32.mrb[0].mxu0
    %875 = vmatprep.mubr.f32.mxu0 0.0
    %876 = vmatmul.mubr.f32.gmra.mrb[0].mxu0 %v658
    %v877 = vpop.f32.mrb[0].mxu0
    %v878 = vadd.f32 0.0, %v877
    %v879 = vpop.f32.mrb[0].mxu0
    %880 = vdwg.mxu0
    %v882 = vrot.slane %v792, 7
    %v887 = vrot.slane %v774, 7
    %v888 = vrot.slane %v780, 7
    %v889 = vsel %vm311, %v887, %v888
    %v890 = vrot.slane %v786, 7
    %v891 = vsel %vm311, %v888, %v890
    %v892 = vsel %vm311, %v890, %v882
    %v897 = vsel %vm311, %v882, %v887
    %v898 = vsel %vm301, 0.0, %v897
    %v899 = vsel %vm302, 0.0, %v889
    %v900 = vsel %vm303, 0.0, %v891
    %v901 = vsel %vm304, 0.0, %v892
    %v906 = vrot.slane %v863, 1
    %v907 = vrot.slane %v868, 1
    %v908 = vsel %vm335, %v906, %v907
    %v909 = vrot.slane %v873, 1
    %v910 = vsel %vm335, %v907, %v909
    %v911 = vrot.slane %v878, 1
    %v912 = vsel %vm335, %v909, %v911
    %v918 = vsel %vm335, %v911, %v906
    %v919 = vsel %vm327, 0.0, %v908
    %v920 = vsel %vm328, 0.0, %v910
    %v921 = vsel %vm329, 0.0, %v912
    %v922 = vsel %vm330, 0.0, %v918
    %927 = vrot.lane.b32.xlu0 %v898, 32
    %v928 = vpop.permute.xlu0 %927
    %929 = vrot.lane.b32.xlu0 %v899, 32
    %v930 = vpop.permute.xlu0 %929
    %931 = vrot.lane.b32.xlu0 %v900, 32
    %v932 = vpop.permute.xlu0 %931
    %933 = vrot.lane.b32.xlu0 %v901, 32
    %v934 = vpop.permute.xlu0 %933
    %v939 = vadd.f32 %v774, %v928
    %v940 = vadd.f32 %v780, %v930
    %v941 = vadd.f32 %v786, %v932
    %v942 = vadd.f32 %v792, %v934
    %947 = vrot.lane.b32.xlu0 %v919, 96
    %v948 = vpop.permute.xlu0 %947
    %949 = vrot.lane.b32.xlu0 %v920, 96
    %v950 = vpop.permute.xlu0 %949
    %951 = vrot.lane.b32.xlu0 %v921, 96
    %v952 = vpop.permute.xlu0 %951
    %953 = vrot.lane.b32.xlu0 %v922, 96
    %v954 = vpop.permute.xlu0 %953
    %v959 = vadd.f32 %v863, %v948
    %v960 = vadd.f32 %v868, %v950
    %v961 = vadd.f32 %v873, %v952
    %v962 = vadd.f32 %v878, %v954
    %967 = vrot.lane.b32.xlu0 %v939, 96
    %v968 = vpop.permute.xlu0 %967
    %969 = vrot.lane.b32.xlu0 %v940, 96
    %v970 = vpop.permute.xlu0 %969
    %971 = vrot.lane.b32.xlu0 %v941, 96
    %v972 = vpop.permute.xlu0 %971
    %973 = vrot.lane.b32.xlu0 %v942, 96
    %v974 = vpop.permute.xlu0 %973
    %983 = vrot.lane.b32.xlu0 %v774, 96
    %v984 = vpop.permute.xlu0 %983
    %985 = vrot.lane.b32.xlu0 %v776, 96
    %v986 = vpop.permute.xlu0 %985
    %987 = vrot.lane.b32.xlu0 %v780, 96
    %v988 = vpop.permute.xlu0 %987
    %989 = vrot.lane.b32.xlu0 %v782, 96
    %v990 = vpop.permute.xlu0 %989
    %991 = vrot.lane.b32.xlu0 %v786, 96
    %v992 = vpop.permute.xlu0 %991
    %993 = vrot.lane.b32.xlu0 %v788, 96
    %v994 = vpop.permute.xlu0 %993
    %995 = vrot.lane.b32.xlu0 %v792, 96
    %v996 = vpop.permute.xlu0 %995
    %997 = vrot.lane.b32.xlu0 %v794, 96
    %v998 = vpop.permute.xlu0 %997
    %v999 = vsel %vm650, %v984, %v986
    %v1000 = vsel %vm650, %v988, %v990
    %v1001 = vsel %vm650, %v992, %v994
    %v1002 = vsel %vm650, %v996, %v998
    %1015 = vrot.lane.b32.xlu0 %v959, 96
    %v1016 = vpop.permute.xlu0 %1015
    %1017 = vrot.lane.b32.xlu0 %v960, 96
    %v1018 = vpop.permute.xlu0 %1017
    %1019 = vrot.lane.b32.xlu0 %v961, 96
    %v1020 = vpop.permute.xlu0 %1019
    %1021 = vrot.lane.b32.xlu0 %v962, 96
    %v1022 = vpop.permute.xlu0 %1021
    %v1027 = vsel %vm61, %v968, %v999
    %v1028 = vsel %vm61, %v970, %v1000
    %v1029 = vsel %vm61, %v972, %v1001
    %v1030 = vsel %vm61, %v974, %v1002
    %v1031 = vsel %vm650, %v986, %v1016
    %v1032 = vsel %vm650, %v990, %v1018
    %v1033 = vsel %vm650, %v994, %v1020
    %v1034 = vsel %vm650, %v998, %v1022
    %v1035 = vld [vmem:[%s4] sm:$0x3]
    %v1037 = vlaneseq
    %v1038 = vshrl.u32 %v1037, 7
    %v1039 = vsub.s32 0, %v1038
    %v1040 = vrot.slane %v1035, %v1039
    %v1041 = vlaneseq
    %v1042 = vshrl.u32 %v1041, 7
    %v1043 = vsub.s32 1, %v1042
    %v1044 = vrot.slane %v1035, %v1043
    %v1047 = vadd.f32 %v1027, %v1040
    %v1048 = vadd.f32 %v1031, %v1044
    %v1049 = vadd.f32 %v1028, %v1040
    %v1050 = vadd.f32 %v1032, %v1044
    %v1051 = vadd.f32 %v1029, %v1040
    %v1052 = vadd.f32 %v1033, %v1044
    %v1053 = vadd.f32 %v1030, %v1040
    %v1054 = vadd.f32 %v1034, %v1044
    %v1055 = vmax.f32 %v1047, 0.0
    %v1056 = vmax.f32 %v1048, 0.0
    %v1057 = vmax.f32 %v1049, 0.0
    %v1058 = vmax.f32 %v1050, 0.0
    %v1059 = vmax.f32 %v1051, 0.0
    %v1060 = vmax.f32 %v1052, 0.0
    %v1061 = vmax.f32 %v1053, 0.0
    %v1062 = vmax.f32 %v1054, 0.0
    %1067 = vrot.lane.b32.xlu0 %v1055, 96
    %v1068 = vpop.permute.xlu0 %1067
    %1069 = vrot.lane.b32.xlu0 %v1057, 96
    %v1070 = vpop.permute.xlu0 %1069
    %1071 = vrot.lane.b32.xlu0 %v1059, 96
    %v1072 = vpop.permute.xlu0 %1071
    %1073 = vrot.lane.b32.xlu0 %v1061, 96
    %v1074 = vpop.permute.xlu0 %1073
    %v1079 = vmax.f32 %v1055, %v1068
    %v1080 = vmax.f32 %v1057, %v1070
    %v1081 = vmax.f32 %v1059, %v1072
    %v1082 = vmax.f32 %v1061, %v1074
    %1087 = vrot.lane.b32.xlu0 %v1056, 96
    %v1088 = vpop.permute.xlu0 %1087
    %1089 = vrot.lane.b32.xlu0 %v1058, 96
    %v1090 = vpop.permute.xlu0 %1089
    %1091 = vrot.lane.b32.xlu0 %v1060, 96
    %v1092 = vpop.permute.xlu0 %1091
    %1093 = vrot.lane.b32.xlu0 %v1062, 96
    %v1094 = vpop.permute.xlu0 %1093
    %v1099 = vmax.f32 %v1056, %v1088
    %v1100 = vmax.f32 %v1058, %v1090
    %v1101 = vmax.f32 %v1060, %v1092
    %v1102 = vmax.f32 %v1062, %v1094
    %1107 = vrot.lane.b32.xlu0 %v1079, 96
    %v1108 = vpop.permute.xlu0 %1107
    %1109 = vrot.lane.b32.xlu0 %v1080, 96
    %v1110 = vpop.permute.xlu0 %1109
    %1111 = vrot.lane.b32.xlu0 %v1081, 96
    %v1112 = vpop.permute.xlu0 %1111
    %1113 = vrot.lane.b32.xlu0 %v1082, 96
    %v1114 = vpop.permute.xlu0 %1113
    %1123 = vrot.lane.b32.xlu0 %v1099, 64
    %v1124 = vpop.permute.xlu0 %1123
    %1125 = vrot.lane.b32.xlu0 %v1100, 64
    %v1126 = vpop.permute.xlu0 %1125
    %1127 = vrot.lane.b32.xlu0 %v1101, 64
    %v1128 = vpop.permute.xlu0 %1127
    %1129 = vrot.lane.b32.xlu0 %v1102, 64
    %v1130 = vpop.permute.xlu0 %1129
    %1135 = vrot.lane.b32.xlu0 %v1099, 32
    %v1136 = vpop.permute.xlu0 %1135
    %1137 = vrot.lane.b32.xlu0 %v1100, 32
    %v1138 = vpop.permute.xlu0 %1137
    %1139 = vrot.lane.b32.xlu0 %v1101, 32
    %v1140 = vpop.permute.xlu0 %1139
    %1141 = vrot.lane.b32.xlu0 %v1102, 32
    %v1142 = vpop.permute.xlu0 %1141
    %v1147 = vsel %vm61, %v1079, %v1108
    %v1148 = vsel %vm61, %v1080, %v1110
    %v1149 = vsel %vm61, %v1081, %v1112
    %v1150 = vsel %vm61, %v1082, %v1114
    %v1151 = vsel %vm640, %v1147, %v1124
    %v1152 = vsel %vm640, %v1148, %v1126
    %v1153 = vsel %vm640, %v1149, %v1128
    %v1154 = vsel %vm640, %v1150, %v1130
    %v1155 = vsel %vm650, %v1151, %v1136
    %v1156 = vsel %vm650, %v1152, %v1138
    %v1157 = vsel %vm650, %v1153, %v1140
    %v1158 = vsel %vm650, %v1154, %v1142
    %v1159 = vld [vmem:[%s5] sm:$0xff]
    %v1160 = vld [vmem:[%s5 + $0x8] sm:$0xff]
    %v1161 = vld [vmem:[%s5 + $0x10] sm:$0xff]
    %v1162 = vld [vmem:[%s5 + $0x18] sm:$0xff]
    %v1163 = vld [vmem:[%s5 + $0x20] sm:$0xff]
    %v1164 = vld [vmem:[%s5 + $0x28] sm:$0xff]
    %v1165 = vld [vmem:[%s5 + $0x30] sm:$0xff]
    %v1166 = vld [vmem:[%s5 + $0x38] sm:$0xff]
    %v1167 = vld [vmem:[%s5 + $0x40] sm:$0xff]
    %v1168 = vld [vmem:[%s5 + $0x48] sm:$0xff]
    %v1169 = vld [vmem:[%s5 + $0x50] sm:$0xff]
    %v1170 = vld [vmem:[%s5 + $0x58] sm:$0xff]
    %v1171 = vld [vmem:[%s5 + $0x60] sm:$0xff]
    %v1172 = vld [vmem:[%s5 + $0x68] sm:$0xff]
    %v1173 = vld [vmem:[%s5 + $0x70] sm:$0xff]
    %v1174 = vld [vmem:[%s5 + $0x78] sm:$0xff]
    %v1175 = vld [vmem:[%s5 + $0x80] sm:$0xff]
    %v1176 = vld [vmem:[%s5 + $0x88] sm:$0xff]
    %v1177 = vld [vmem:[%s5 + $0x90] sm:$0xff]
    %v1178 = vld [vmem:[%s5 + $0x98] sm:$0xff]
    %v1179 = vld [vmem:[%s5 + $0xa0] sm:$0xff]
    %v1180 = vld [vmem:[%s5 + $0xa8] sm:$0xff]
    %v1181 = vld [vmem:[%s5 + $0xb0] sm:$0xff]
    %v1182 = vld [vmem:[%s5 + $0xb8] sm:$0xff]
    %v1183 = vld [vmem:[%s5 + $0xc0] sm:$0xff]
    %v1184 = vld [vmem:[%s5 + $0xc8] sm:$0xff]
    %v1185 = vld [vmem:[%s5 + $0xd0] sm:$0xff]
    %v1186 = vld [vmem:[%s5 + $0xd8] sm:$0xff]
    %v1187 = vld [vmem:[%s5 + $0xe0] sm:$0xff]
    %v1188 = vld [vmem:[%s5 + $0xe8] sm:$0xff]
    %v1189 = vld [vmem:[%s5 + $0xf0] sm:$0xff]
    %v1190 = vld [vmem:[%s5 + $0xf8] sm:$0xff]
    %1191 = vmatprep.subr.mxu0 %v1160
    %1192 = vmatpush1.msra.mxu0 %v1159
    %1193 = vmatprep.subr.mxu0 %v1162
    %1194 = vmatpush1.msra.mxu0 %v1161
    %1195 = vmatprep.subr.mxu0 %v1164
    %1196 = vmatpush1.msra.mxu0 %v1163
    %1197 = vmatprep.subr.mxu0 %v1166
    %1198 = vmatpush1.msra.mxu0 %v1165
    %1199 = vmatprep.subr.mxu0 %v1168
    %1200 = vmatpush1.msra.mxu0 %v1167
    %1201 = vmatprep.subr.mxu0 %v1170
    %1202 = vmatpush1.msra.mxu0 %v1169
    %1203 = vmatprep.subr.mxu0 %v1172
    %1204 = vmatpush1.msra.mxu0 %v1171
    %1205 = vmatprep.subr.mxu0 %v1174
    %1206 = vmatpush1.msra.mxu0 %v1173
    %1207 = vmatprep.subr.mxu0 %v1176
    %1208 = vmatpush1.msra.mxu0 %v1175
    %1209 = vmatprep.subr.mxu0 %v1178
    %1210 = vmatpush1.msra.mxu0 %v1177
    %1211 = vmatprep.subr.mxu0 %v1180
    %1212 = vmatpush1.msra.mxu0 %v1179
    %1213 = vmatprep.subr.mxu0 %v1182
    %1214 = vmatpush1.msra.mxu0 %v1181
    %1215 = vmatprep.subr.mxu0 %v1184
    %1216 = vmatpush1.msra.mxu0 %v1183
    %1217 = vmatprep.subr.mxu0 %v1186
    %1218 = vmatpush1.msra.mxu0 %v1185
    %1219 = vmatprep.subr.mxu0 %v1188
    %1220 = vmatpush1.msra.mxu0 %v1187
    %1221 = vmatprep.subr.mxu0 %v1190
    %1222 = vmatpush1.msra.mxu0 %v1189
    %1223 = vmatprep.subr.mxu0 0.0
    %1224 = vmatpush1.msra.mxu0 0.0
    %1225 = vmatprep.subr.mxu0 0.0
    %1226 = vmatpush1.msra.mxu0 0.0
    %1227 = vmatprep.subr.mxu0 0.0
    %1228 = vmatpush1.msra.mxu0 0.0
    %1229 = vmatprep.subr.mxu0 0.0
    %1230 = vmatpush1.msra.mxu0 0.0
    %1231 = vmatprep.subr.mxu0 0.0
    %1232 = vmatpush1.msra.mxu0 0.0
    %1233 = vmatprep.subr.mxu0 0.0
    %1234 = vmatpush1.msra.mxu0 0.0
    %1235 = vmatprep.subr.mxu0 0.0
    %1236 = vmatpush1.msra.mxu0 0.0
    %1237 = vmatprep.subr.mxu0 0.0
    %1238 = vmatpush1.msra.mxu0 0.0
    %1239 = vmatprep.subr.mxu0 0.0
    %1240 = vmatpush1.msra.mxu0 0.0
    %1241 = vmatprep.subr.mxu0 0.0
    %1242 = vmatpush1.msra.mxu0 0.0
    %1243 = vmatprep.subr.mxu0 0.0
    %1244 = vmatpush1.msra.mxu0 0.0
    %1245 = vmatprep.subr.mxu0 0.0
    %1246 = vmatpush1.msra.mxu0 0.0
    %1247 = vmatprep.subr.mxu0 0.0
    %1248 = vmatpush1.msra.mxu0 0.0
    %1249 = vmatprep.subr.mxu0 0.0
    %1250 = vmatpush1.msra.mxu0 0.0
    %1251 = vmatprep.subr.mxu0 0.0
    %1252 = vmatpush1.msra.mxu0 0.0
    %1253 = vmatprep.subr.mxu0 0.0
    %1254 = vmatpush1.msra.mxu0 0.0
    %1255 = vmatprep.mubr.f32.mxu0 0.0
    %1256 = vmatmul.mubr.f32.gmra.mrb[0].mxu0 %v1155
    %v1257 = vpop.f32.mrb[0].mxu0
    %v1258 = vadd.f32 0.0, %v1257
    %v1259 = vpop.f32.mrb[0].mxu0
    %v1260 = vadd.f32 0.0, %v1259
    %1261 = vmatprep.mubr.f32.mxu0 0.0
    %1262 = vmatmul.mubr.f32.gmra.mrb[0].mxu0 %v1156
    %v1263 = vpop.f32.mrb[0].mxu0
    %v1264 = vadd.f32 0.0, %v1263
    %v1265 = vpop.f32.mrb[0].mxu0
    %v1266 = vadd.f32 0.0, %v1265
    %1267 = vmatprep.mubr.f32.mxu0 0.0
    %1268 = vmatmul.mubr.f32.gmra.mrb[0].mxu0 %v1157
    %v1269 = vpop.f32.mrb[0].mxu0
    %v1270 = vadd.f32 0.0, %v1269
    %v1271 = vpop.f32.mrb[0].mxu0
    %v1272 = vadd.f32 0.0, %v1271
    %1273 = vmatprep.mubr.f32.mxu0 0.0
    %1274 = vmatmul.mubr.f32.gmra.mrb[0].mxu0 %v1158
    %v1275 = vpop.f32.mrb[0].mxu0
    %v1276 = vadd.f32 0.0, %v1275
    %v1277 = vpop.f32.mrb[0].mxu0
    %v1278 = vadd.f32 0.0, %v1277
    %1279 = vdwg.mxu0
    %v1281 = vrot.slane %v1276, 7
    %v1286 = vrot.slane %v1258, 7
    %v1287 = vrot.slane %v1264, 7
    %v1288 = vsel %vm311, %v1286, %v1287
    %v1289 = vrot.slane %v1270, 7
    %v1290 = vsel %vm311, %v1287, %v1289
    %v1291 = vsel %vm311, %v1289, %v1281
    %v1296 = vsel %vm311, %v1281, %v1286
    %v1297 = vsel %vm301, 0.0, %v1296
    %v1298 = vsel %vm302, 0.0, %v1288
    %v1299 = vsel %vm303, 0.0, %v1290
    %v1300 = vsel %vm304, 0.0, %v1291
    %v1305 = vrot.slane %v1260, 1
    %v1306 = vrot.slane %v1266, 1
    %v1307 = vsel %vm335, %v1305, %v1306
    %v1308 = vrot.slane %v1272, 1
    %v1309 = vsel %vm335, %v1306, %v1308
    %v1310 = vrot.slane %v1278, 1
    %v1311 = vsel %vm335, %v1308, %v1310
    %v1317 = vsel %vm335, %v1310, %v1305
    %v1318 = vsel %vm327, 0.0, %v1307
    %v1319 = vsel %vm328, 0.0, %v1309
    %v1320 = vsel %vm329, 0.0, %v1311
    %v1321 = vsel %vm330, 0.0, %v1317
    %1326 = vrot.lane.b32.xlu0 %v1297, 32
    %v1327 = vpop.permute.xlu0 %1326
    %1328 = vrot.lane.b32.xlu0 %v1298, 32
    %v1329 = vpop.permute.xlu0 %1328
    %1330 = vrot.lane.b32.xlu0 %v1299, 32
    %v1331 = vpop.permute.xlu0 %1330
    %1332 = vrot.lane.b32.xlu0 %v1300, 32
    %v1333 = vpop.permute.xlu0 %1332
    %v1338 = vadd.f32 %v1258, %v1327
    %v1339 = vadd.f32 %v1264, %v1329
    %v1340 = vadd.f32 %v1270, %v1331
    %v1341 = vadd.f32 %v1276, %v1333
    %1346 = vrot.lane.b32.xlu0 %v1318, 96
    %v1347 = vpop.permute.xlu0 %1346
    %1348 = vrot.lane.b32.xlu0 %v1319, 96
    %v1349 = vpop.permute.xlu0 %1348
    %1350 = vrot.lane.b32.xlu0 %v1320, 96
    %v1351 = vpop.permute.xlu0 %1350
    %1352 = vrot.lane.b32.xlu0 %v1321, 96
    %v1353 = vpop.permute.xlu0 %1352
    %v1358 = vadd.f32 %v1260, %v1347
    %v1359 = vadd.f32 %v1266, %v1349
    %v1360 = vadd.f32 %v1272, %v1351
    %v1361 = vadd.f32 %v1278, %v1353
    %1366 = vrot.lane.b32.xlu0 %v1338, 96
    %v1367 = vpop.permute.xlu0 %1366
    %1368 = vrot.lane.b32.xlu0 %v1339, 96
    %v1369 = vpop.permute.xlu0 %1368
    %1370 = vrot.lane.b32.xlu0 %v1340, 96
    %v1371 = vpop.permute.xlu0 %1370
    %1372 = vrot.lane.b32.xlu0 %v1341, 96
    %v1373 = vpop.permute.xlu0 %1372
    %1378 = vrot.lane.b32.xlu0 %v1258, 96
    %v1379 = vpop.permute.xlu0 %1378
    %1380 = vrot.lane.b32.xlu0 %v1264, 96
    %v1381 = vpop.permute.xlu0 %1380
    %1382 = vrot.lane.b32.xlu0 %v1270, 96
    %v1383 = vpop.permute.xlu0 %1382
    %1384 = vrot.lane.b32.xlu0 %v1276, 96
    %v1385 = vpop.permute.xlu0 %1384
    %1394 = vrot.lane.b32.xlu0 %v1358, 96
    %v1395 = vpop.permute.xlu0 %1394
    %1396 = vrot.lane.b32.xlu0 %v1359, 96
    %v1397 = vpop.permute.xlu0 %1396
    %1398 = vrot.lane.b32.xlu0 %v1360, 96
    %v1399 = vpop.permute.xlu0 %1398
    %1400 = vrot.lane.b32.xlu0 %v1361, 96
    %v1401 = vpop.permute.xlu0 %1400
    %v1406 = vsel %vm61, %v1367, %v1379
    %v1407 = vsel %vm61, %v1369, %v1381
    %v1408 = vsel %vm61, %v1371, %v1383
    %v1409 = vsel %vm61, %v1373, %v1385
    %v1410 = vsel %vm650, %v1406, %v1395
    %v1411 = vsel %vm650, %v1407, %v1397
    %v1412 = vsel %vm650, %v1408, %v1399
    %v1413 = vsel %vm650, %v1409, %v1401
    %v1414 = vld [vmem:[%s6] sm:$0x1]
    %v1416 = vlaneseq
    %v1417 = vshrl.u32 %v1416, 7
    %v1418 = vsub.s32 0, %v1417
    %v1419 = vrot.slane %v1414, %v1418
    %v1421 = vadd.f32 %v1410, %v1419
    %v1422 = vadd.f32 %v1411, %v1419
    %v1423 = vadd.f32 %v1412, %v1419
    %v1424 = vadd.f32 %v1413, %v1419
    %v1425 = vmax.f32 %v1421, 0.0
    %v1426 = vmax.f32 %v1422, 0.0
    %v1427 = vmax.f32 %v1423, 0.0
    %v1428 = vmax.f32 %v1424, 0.0
    %1433 = vrot.lane.b32.xlu0 %v1425, 112
    %v1434 = vpop.permute.xlu0 %1433
    %1435 = vrot.lane.b32.xlu0 %v1426, 112
    %v1436 = vpop.permute.xlu0 %1435
    %1437 = vrot.lane.b32.xlu0 %v1427, 112
    %v1438 = vpop.permute.xlu0 %1437
    %1439 = vrot.lane.b32.xlu0 %v1428, 112
    %v1440 = vpop.permute.xlu0 %1439
    %v1445 = vmax.f32 %v1425, %v1434
    %v1446 = vmax.f32 %v1426, %v1436
    %v1447 = vmax.f32 %v1427, %v1438
    %v1448 = vmax.f32 %v1428, %v1440
    %1453 = vrot.lane.b32.xlu0 %v1445, 96
    %v1454 = vpop.permute.xlu0 %1453
    %1455 = vrot.lane.b32.xlu0 %v1446, 96
    %v1456 = vpop.permute.xlu0 %1455
    %1457 = vrot.lane.b32.xlu0 %v1447, 96
    %v1458 = vpop.permute.xlu0 %1457
    %1459 = vrot.lane.b32.xlu0 %v1448, 96
    %v1460 = vpop.permute.xlu0 %1459
    %v1465 = vmax.f32 %v1445, %v1454
    %v1466 = vmax.f32 %v1446, %v1456
    %v1467 = vmax.f32 %v1447, %v1458
    %v1468 = vmax.f32 %v1448, %v1460
    %1473 = vrot.lane.b32.xlu0 %v1465, 80
    %v1474 = vpop.permute.xlu0 %1473
    %1475 = vrot.lane.b32.xlu0 %v1466, 80
    %v1476 = vpop.permute.xlu0 %1475
    %1477 = vrot.lane.b32.xlu0 %v1467, 80
    %v1478 = vpop.permute.xlu0 %1477
    %1479 = vrot.lane.b32.xlu0 %v1468, 80
    %v1480 = vpop.permute.xlu0 %1479
    %v1485 = vsel %vm458, %v1465, %v1474
    %v1486 = vsel %vm458, %v1466, %v1476
    %v1487 = vsel %vm458, %v1467, %v1478
    %v1488 = vsel %vm458, %v1468, %v1480
    %v1489 = vld [vmem:[%s7] sm:$0xff]
    %v1490 = vld [vmem:[%s7 + $0x8] sm:$0xff]
    %v1491 = vld [vmem:[%s7 + $0x10] sm:$0xff]
    %v1492 = vld [vmem:[%s7 + $0x18] sm:$0xff]
    %v1494 = vsel %vm61, %v1485, 0
    %v1497 = vsel %vm61, %v1486, 0
    %v1500 = vsel %vm61, %v1487, 0
    %v1503 = vsel %vm61, %v1488, 0
    %1505 = vmatprep.subr.mxu0 0.0
    %1506 = vmatpush1.msra.mxu0 %v1489
    %1507 = vmatprep.subr.mxu0 0.0
    %1508 = vmatpush1.msra.mxu0 %v1490
    %1509 = vmatprep.subr.mxu0 0.0
    %1510 = vmatpush1.msra.mxu0 %v1491
    %1511 = vmatprep.subr.mxu0 0.0
    %1512 = vmatpush1.msra.mxu0 %v1492
    %1513 = vmatprep.subr.mxu0 0.0
    %1514 = vmatpush1.msra.mxu0 0.0
    %1515 = vmatprep.subr.mxu0 0.0
    %1516 = vmatpush1.msra.mxu0 0.0
    %1517 = vmatprep.subr.mxu0 0.0
    %1518 = vmatpush1.msra.mxu0 0.0
    %1519 = vmatprep.subr.mxu0 0.0
    %1520 = vmatpush1.msra.mxu0 0.0
    %1521 = vmatprep.subr.mxu0 0.0
    %1522 = vmatpush1.msra.mxu0 0.0
    %1523 = vmatprep.subr.mxu0 0.0
    %1524 = vmatpush1.msra.mxu0 0.0
    %1525 = vmatprep.subr.mxu0 0.0
    %1526 = vmatpush1.msra.mxu0 0.0
    %1527 = vmatprep.subr.mxu0 0.0
    %1528 = vmatpush1.msra.mxu0 0.0
    %1529 = vmatprep.subr.mxu0 0.0
    %1530 = vmatpush1.msra.mxu0 0.0
    %1531 = vmatprep.subr.mxu0 0.0
    %1532 = vmatpush1.msra.mxu0 0.0
    %1533 = vmatprep.subr.mxu0 0.0
    %1534 = vmatpush1.msra.mxu0 0.0
    %1535 = vmatprep.subr.mxu0 0.0
    %1536 = vmatpush1.msra.mxu0 0.0
    %1537 = vmatprep.subr.mxu0 0.0
    %1538 = vmatpush1.msra.mxu0 0.0
    %1539 = vmatprep.subr.mxu0 0.0
    %1540 = vmatpush1.msra.mxu0 0.0
    %1541 = vmatprep.subr.mxu0 0.0
    %1542 = vmatpush1.msra.mxu0 0.0
    %1543 = vmatprep.subr.mxu0 0.0
    %1544 = vmatpush1.msra.mxu0 0.0
    %1545 = vmatprep.subr.mxu0 0.0
    %1546 = vmatpush1.msra.mxu0 0.0
    %1547 = vmatprep.subr.mxu0 0.0
    %1548 = vmatpush1.msra.mxu0 0.0
    %1549 = vmatprep.subr.mxu0 0.0
    %1550 = vmatpush1.msra.mxu0 0.0
    %1551 = vmatprep.subr.mxu0 0.0
    %1552 = vmatpush1.msra.mxu0 0.0
    %1553 = vmatprep.subr.mxu0 0.0
    %1554 = vmatpush1.msra.mxu0 0.0
    %1555 = vmatprep.subr.mxu0 0.0
    %1556 = vmatpush1.msra.mxu0 0.0
    %1557 = vmatprep.subr.mxu0 0.0
    %1558 = vmatpush1.msra.mxu0 0.0
    %1559 = vmatprep.subr.mxu0 0.0
    %1560 = vmatpush1.msra.mxu0 0.0
    %1561 = vmatprep.subr.mxu0 0.0
    %1562 = vmatpush1.msra.mxu0 0.0
    %1563 = vmatprep.subr.mxu0 0.0
    %1564 = vmatpush1.msra.mxu0 0.0
    %1565 = vmatprep.subr.mxu0 0.0
    %1566 = vmatpush1.msra.mxu0 0.0
    %1567 = vmatprep.subr.mxu0 0.0
    %1568 = vmatpush1.msra.mxu0 0.0
    %1569 = vmatprep.mubr.f32.mxu0 0.0
    %1570 = vmatmul.mubr.f32.gmra.mrb[0].mxu0 %v1494
    %v1571 = vpop.f32.mrb[0].mxu0
    %v1572 = vadd.f32 0.0, %v1571
    %v1573 = vpop.f32.mrb[0].mxu0
    %1574 = vmatprep.mubr.f32.mxu0 0.0
    %1575 = vmatmul.mubr.f32.gmra.mrb[0].mxu0 %v1497
    %v1576 = vpop.f32.mrb[0].mxu0
    %v1577 = vadd.f32 0.0, %v1576
    %v1578 = vpop.f32.mrb[0].mxu0
    %1579 = vmatprep.mubr.f32.mxu0 0.0
    %1580 = vmatmul.mubr.f32.gmra.mrb[0].mxu0 %v1500
    %v1581 = vpop.f32.mrb[0].mxu0
    %v1582 = vadd.f32 0.0, %v1581
    %v1583 = vpop.f32.mrb[0].mxu0
    %1584 = vmatprep.mubr.f32.mxu0 0.0
    %1585 = vmatmul.mubr.f32.gmra.mrb[0].mxu0 %v1503
    %v1586 = vpop.f32.mrb[0].mxu0
    %v1587 = vadd.f32 0.0, %v1586
    %v1588 = vpop.f32.mrb[0].mxu0
    %1589 = vdwg.mxu0
    %v1591 = vrot.slane %v1587, 7
    %v1596 = vrot.slane %v1572, 7
    %v1597 = vrot.slane %v1577, 7
    %v1598 = vsel %vm311, %v1596, %v1597
    %v1599 = vrot.slane %v1582, 7
    %v1600 = vsel %vm311, %v1597, %v1599
    %v1601 = vsel %vm311, %v1599, %v1591
    %v1606 = vsel %vm311, %v1591, %v1596
    %v1607 = vsel %vm301, 0.0, %v1606
    %v1608 = vsel %vm302, 0.0, %v1598
    %v1609 = vsel %vm303, 0.0, %v1600
    %v1610 = vsel %vm304, 0.0, %v1601
    %v1611 = vrot.slane %v1572, 1
    %v1612 = vrot.slane %v1577, 1
    %v1613 = vsel %vm335, %v1611, %v1612
    %v1614 = vrot.slane %v1582, 1
    %v1615 = vsel %vm335, %v1612, %v1614
    %v1616 = vrot.slane %v1587, 1
    %v1617 = vsel %vm335, %v1614, %v1616
    %v1623 = vsel %vm335, %v1616, %v1611
    %v1624 = vsel %vm327, 0.0, %v1613
    %v1625 = vsel %vm328, 0.0, %v1615
    %v1626 = vsel %vm329, 0.0, %v1617
    %v1627 = vsel %vm330, 0.0, %v1623
    %1632 = vrot.lane.b32.xlu0 %v1607, 32
    %v1633 = vpop.permute.xlu0 %1632
    %1634 = vrot.lane.b32.xlu0 %v1608, 32
    %v1635 = vpop.permute.xlu0 %1634
    %1636 = vrot.lane.b32.xlu0 %v1609, 32
    %v1637 = vpop.permute.xlu0 %1636
    %1638 = vrot.lane.b32.xlu0 %v1610, 32
    %v1639 = vpop.permute.xlu0 %1638
    %v1644 = vadd.f32 %v1572, %v1633
    %v1645 = vadd.f32 %v1577, %v1635
    %v1646 = vadd.f32 %v1582, %v1637
    %v1647 = vadd.f32 %v1587, %v1639
    %1652 = vrot.lane.b32.xlu0 %v1624, 96
    %v1653 = vpop.permute.xlu0 %1652
    %1654 = vrot.lane.b32.xlu0 %v1625, 96
    %v1655 = vpop.permute.xlu0 %1654
    %1656 = vrot.lane.b32.xlu0 %v1626, 96
    %v1657 = vpop.permute.xlu0 %1656
    %1658 = vrot.lane.b32.xlu0 %v1627, 96
    %v1659 = vpop.permute.xlu0 %1658
    %v1664 = vadd.f32 %v1572, %v1653
    %v1665 = vadd.f32 %v1577, %v1655
    %v1666 = vadd.f32 %v1582, %v1657
    %v1667 = vadd.f32 %v1587, %v1659
    %1672 = vrot.lane.b32.xlu0 %v1644, 96
    %v1673 = vpop.permute.xlu0 %1672
    %1674 = vrot.lane.b32.xlu0 %v1645, 96
    %v1675 = vpop.permute.xlu0 %1674
    %1676 = vrot.lane.b32.xlu0 %v1646, 96
    %v1677 = vpop.permute.xlu0 %1676
    %1678 = vrot.lane.b32.xlu0 %v1647, 96
    %v1679 = vpop.permute.xlu0 %1678
    %1688 = vrot.lane.b32.xlu0 %v1664, 96
    %v1689 = vpop.permute.xlu0 %1688
    %1690 = vrot.lane.b32.xlu0 %v1665, 96
    %v1691 = vpop.permute.xlu0 %1690
    %1692 = vrot.lane.b32.xlu0 %v1666, 96
    %v1693 = vpop.permute.xlu0 %1692
    %1694 = vrot.lane.b32.xlu0 %v1667, 96
    %v1695 = vpop.permute.xlu0 %1694
    %v1700 = vsel %vm61, %v1673, %v1689
    %v1701 = vsel %vm61, %v1675, %v1691
    %v1702 = vsel %vm61, %v1677, %v1693
    %v1703 = vsel %vm61, %v1679, %v1695
    %v1704 = vld [vmem:[%s8] sm:$0x1]
    %v1706 = vlaneseq
    %v1707 = vshrl.u32 %v1706, 7
    %v1708 = vsub.s32 0, %v1707
    %v1709 = vrot.slane %v1704, %v1708
    %v1711 = vadd.f32 %v1700, %v1709
    %v1712 = vadd.f32 %v1701, %v1709
    %v1713 = vadd.f32 %v1702, %v1709
    %v1714 = vadd.f32 %v1703, %v1709
    %v1715 = vmax.f32 %v1711, 0.0
    %v1716 = vmax.f32 %v1712, 0.0
    %v1717 = vmax.f32 %v1713, 0.0
    %v1718 = vmax.f32 %v1714, 0.0
    %1723 = vrot.lane.b32.xlu0 %v1715, 96
    %v1724 = vpop.permute.xlu0 %1723
    %1725 = vrot.lane.b32.xlu0 %v1716, 96
    %v1726 = vpop.permute.xlu0 %1725
    %1727 = vrot.lane.b32.xlu0 %v1717, 96
    %v1728 = vpop.permute.xlu0 %1727
    %1729 = vrot.lane.b32.xlu0 %v1718, 96
    %v1730 = vpop.permute.xlu0 %1729
    %v1735 = vmax.f32 %v1715, %v1724
    %v1736 = vmax.f32 %v1716, %v1726
    %v1737 = vmax.f32 %v1717, %v1728
    %v1738 = vmax.f32 %v1718, %v1730
    %v1739 = vld [vmem:[%s9] sm:$0xff]
    %v1740 = vld [vmem:[%s9 + $0x8] sm:$0xff]
    %v1741 = vld [vmem:[%s9 + $0x10] sm:$0xff]
    %v1742 = vld [vmem:[%s9 + $0x18] sm:$0xff]
    %v1744 = vsel %vm61, %v1735, 0
    %v1747 = vsel %vm61, %v1736, 0
    %v1750 = vsel %vm61, %v1737, 0
    %v1753 = vsel %vm61, %v1738, 0
    %1755 = vmatprep.subr.mxu0 0.0
    %1756 = vmatpush1.msra.mxu0 %v1739
    %1757 = vmatprep.subr.mxu0 0.0
    %1758 = vmatpush1.msra.mxu0 %v1740
    %1759 = vmatprep.subr.mxu0 0.0
    %1760 = vmatpush1.msra.mxu0 %v1741
    %1761 = vmatprep.subr.mxu0 0.0
    %1762 = vmatpush1.msra.mxu0 %v1742
    %1763 = vmatprep.subr.mxu0 0.0
    %1764 = vmatpush1.msra.mxu0 0.0
    %1765 = vmatprep.subr.mxu0 0.0
    %1766 = vmatpush1.msra.mxu0 0.0
    %1767 = vmatprep.subr.mxu0 0.0
    %1768 = vmatpush1.msra.mxu0 0.0
    %1769 = vmatprep.subr.mxu0 0.0
    %1770 = vmatpush1.msra.mxu0 0.0
    %1771 = vmatprep.subr.mxu0 0.0
    %1772 = vmatpush1.msra.mxu0 0.0
    %1773 = vmatprep.subr.mxu0 0.0
    %1774 = vmatpush1.msra.mxu0 0.0
    %1775 = vmatprep.subr.mxu0 0.0
    %1776 = vmatpush1.msra.mxu0 0.0
    %1777 = vmatprep.subr.mxu0 0.0
    %1778 = vmatpush1.msra.mxu0 0.0
    %1779 = vmatprep.subr.mxu0 0.0
    %1780 = vmatpush1.msra.mxu0 0.0
    %1781 = vmatprep.subr.mxu0 0.0
    %1782 = vmatpush1.msra.mxu0 0.0
    %1783 = vmatprep.subr.mxu0 0.0
    %1784 = vmatpush1.msra.mxu0 0.0
    %1785 = vmatprep.subr.mxu0 0.0
    %1786 = vmatpush1.msra.mxu0 0.0
    %1787 = vmatprep.subr.mxu0 0.0
    %1788 = vmatpush1.msra.mxu0 0.0
    %1789 = vmatprep.subr.mxu0 0.0
    %1790 = vmatpush1.msra.mxu0 0.0
    %1791 = vmatprep.subr.mxu0 0.0
    %1792 = vmatpush1.msra.mxu0 0.0
    %1793 = vmatprep.subr.mxu0 0.0
    %1794 = vmatpush1.msra.mxu0 0.0
    %1795 = vmatprep.subr.mxu0 0.0
    %1796 = vmatpush1.msra.mxu0 0.0
    %1797 = vmatprep.subr.mxu0 0.0
    %1798 = vmatpush1.msra.mxu0 0.0
    %1799 = vmatprep.subr.mxu0 0.0
    %1800 = vmatpush1.msra.mxu0 0.0
    %1801 = vmatprep.subr.mxu0 0.0
    %1802 = vmatpush1.msra.mxu0 0.0
    %1803 = vmatprep.subr.mxu0 0.0
    %1804 = vmatpush1.msra.mxu0 0.0
    %1805 = vmatprep.subr.mxu0 0.0
    %1806 = vmatpush1.msra.mxu0 0.0
    %1807 = vmatprep.subr.mxu0 0.0
    %1808 = vmatpush1.msra.mxu0 0.0
    %1809 = vmatprep.subr.mxu0 0.0
    %1810 = vmatpush1.msra.mxu0 0.0
    %1811 = vmatprep.subr.mxu0 0.0
    %1812 = vmatpush1.msra.mxu0 0.0
    %1813 = vmatprep.subr.mxu0 0.0
    %1814 = vmatpush1.msra.mxu0 0.0
    %1815 = vmatprep.subr.mxu0 0.0
    %1816 = vmatpush1.msra.mxu0 0.0
    %1817 = vmatprep.subr.mxu0 0.0
    %1818 = vmatpush1.msra.mxu0 0.0
    %1819 = vmatprep.mubr.f32.mxu0 0.0
    %1820 = vmatmul.mubr.f32.gmra.mrb[0].mxu0 %v1744
    %v1821 = vpop.f32.mrb[0].mxu0
    %v1822 = vadd.f32 0.0, %v1821
    %v1823 = vpop.f32.mrb[0].mxu0
    %1824 = vmatprep.mubr.f32.mxu0 0.0
    %1825 = vmatmul.mubr.f32.gmra.mrb[0].mxu0 %v1747
    %v1826 = vpop.f32.mrb[0].mxu0
    %v1827 = vadd.f32 0.0, %v1826
    %v1828 = vpop.f32.mrb[0].mxu0
    %1829 = vmatprep.mubr.f32.mxu0 0.0
    %1830 = vmatmul.mubr.f32.gmra.mrb[0].mxu0 %v1750
    %v1831 = vpop.f32.mrb[0].mxu0
    %v1832 = vadd.f32 0.0, %v1831
    %v1833 = vpop.f32.mrb[0].mxu0
    %1834 = vmatprep.mubr.f32.mxu0 0.0
    %1835 = vmatmul.mubr.f32.gmra.mrb[0].mxu0 %v1753
    %v1836 = vpop.f32.mrb[0].mxu0
    %v1837 = vadd.f32 0.0, %v1836
    %v1838 = vpop.f32.mrb[0].mxu0
    %1839 = vdwg.mxu0
    %v1841 = vrot.slane %v1837, 7
    %v1846 = vrot.slane %v1822, 7
    %v1847 = vrot.slane %v1827, 7
    %v1848 = vsel %vm311, %v1846, %v1847
    %v1849 = vrot.slane %v1832, 7
    %v1850 = vsel %vm311, %v1847, %v1849
    %v1851 = vsel %vm311, %v1849, %v1841
    %v1856 = vsel %vm311, %v1841, %v1846
    %v1857 = vsel %vm301, 0.0, %v1856
    %v1858 = vsel %vm302, 0.0, %v1848
    %v1859 = vsel %vm303, 0.0, %v1850
    %v1860 = vsel %vm304, 0.0, %v1851
    %v1861 = vrot.slane %v1822, 1
    %v1862 = vrot.slane %v1827, 1
    %v1863 = vsel %vm335, %v1861, %v1862
    %v1864 = vrot.slane %v1832, 1
    %v1865 = vsel %vm335, %v1862, %v1864
    %v1866 = vrot.slane %v1837, 1
    %v1867 = vsel %vm335, %v1864, %v1866
    %v1873 = vsel %vm335, %v1866, %v1861
    %v1874 = vsel %vm327, 0.0, %v1863
    %v1875 = vsel %vm328, 0.0, %v1865
    %v1876 = vsel %vm329, 0.0, %v1867
    %v1877 = vsel %vm330, 0.0, %v1873
    %1882 = vrot.lane.b32.xlu0 %v1857, 16
    %v1883 = vpop.permute.xlu0 %1882
    %1884 = vrot.lane.b32.xlu0 %v1858, 16
    %v1885 = vpop.permute.xlu0 %1884
    %1886 = vrot.lane.b32.xlu0 %v1859, 16
    %v1887 = vpop.permute.xlu0 %1886
    %1888 = vrot.lane.b32.xlu0 %v1860, 16
    %v1889 = vpop.permute.xlu0 %1888
    %v1894 = vadd.f32 %v1822, %v1883
    %v1895 = vadd.f32 %v1827, %v1885
    %v1896 = vadd.f32 %v1832, %v1887
    %v1897 = vadd.f32 %v1837, %v1889
    %1902 = vrot.lane.b32.xlu0 %v1874, 112
    %v1903 = vpop.permute.xlu0 %1902
    %1904 = vrot.lane.b32.xlu0 %v1875, 112
    %v1905 = vpop.permute.xlu0 %1904
    %1906 = vrot.lane.b32.xlu0 %v1876, 112
    %v1907 = vpop.permute.xlu0 %1906
    %1908 = vrot.lane.b32.xlu0 %v1877, 112
    %v1909 = vpop.permute.xlu0 %1908
    %v1914 = vadd.f32 %v1894, %v1903
    %v1915 = vadd.f32 %v1895, %v1905
    %v1916 = vadd.f32 %v1896, %v1907
    %v1917 = vadd.f32 %v1897, %v1909
    %v1918 = vld [vmem:[%s10] sm:$0x1]
    %v1920 = vlaneseq
    %v1921 = vshrl.u32 %v1920, 7
    %v1922 = vsub.s32 0, %v1921
    %v1923 = vrot.slane %v1918, %v1922
    %1924 = vrot.lane.b32.xlu0 %v1923, 16
    %v1925 = vpop.permute.xlu0 %1924
    %v1927 = vadd.f32 %v1914, %v1925
    %v1928 = vadd.f32 %v1915, %v1925
    %v1929 = vadd.f32 %v1916, %v1925
    %v1930 = vadd.f32 %v1917, %v1925
    %1935 = vrot.lane.b32.xlu0 %v1927, 112
    %v1936 = vpop.permute.xlu0 %1935
    %1937 = vrot.lane.b32.xlu0 %v1928, 112
    %v1938 = vpop.permute.xlu0 %1937
    %1939 = vrot.lane.b32.xlu0 %v1929, 112
    %v1940 = vpop.permute.xlu0 %1939
    %1941 = vrot.lane.b32.xlu0 %v1930, 112
    %v1942 = vpop.permute.xlu0 %1941
    %1947 = vst.msk [vmem:[#allocation2] sm:$0xff] %vm458, %v1936
    %1948 = vst.msk [vmem:[#allocation2 + $0x8] sm:$0xff] %vm458, %v1938
    %1949 = vst.msk [vmem:[#allocation2 + $0x10] sm:$0xff] %vm458, %v1940
    %1950 = vst.msk [vmem:[#allocation2 + $0x18] sm:$0xff] %vm458, %v1942
    %v1951 = vld [vmem:[#allocation2] ss:$16 sm:$0x3]
    %s1952 = scalar_lea.vmem [#allocation2], 1
    %v1953 = vld [vmem:[%s1952] ss:$16 sm:$0x3]
    %s1954 = scalar_lea.vmem [#allocation2], 2
    %v1955 = vld [vmem:[%s1954] ss:$16 sm:$0x3]
    %s1956 = scalar_lea.vmem [#allocation2], 3
    %v1957 = vld [vmem:[%s1956] ss:$16 sm:$0x3]
    %s1958 = scalar_lea.vmem [#allocation2], 4
    %v1959 = vld [vmem:[%s1958] ss:$16 sm:$0x3]
    %s1960 = scalar_lea.vmem [#allocation2], 5
    %v1961 = vld [vmem:[%s1960] ss:$16 sm:$0x3]
    %s1962 = scalar_lea.vmem [#allocation2], 6
    %v1963 = vld [vmem:[%s1962] ss:$16 sm:$0x3]
    %s1964 = scalar_lea.vmem [#allocation2], 7
    %v1965 = vld [vmem:[%s1964] ss:$16 sm:$0x3]
    %s1966 = scalar_lea.vmem [#allocation2], 8
    %v1967 = vld [vmem:[%s1966] ss:$16 sm:$0x3]
    %s1968 = scalar_lea.vmem [#allocation2], 9
    %v1969 = vld [vmem:[%s1968] ss:$16 sm:$0x3]
    %s1970 = scalar_lea.vmem [#allocation2], 10
    %v1971 = vld [vmem:[%s1970] ss:$16 sm:$0x3]
    %s1972 = scalar_lea.vmem [#allocation2], 11
    %v1973 = vld [vmem:[%s1972] ss:$16 sm:$0x3]
    %s1974 = scalar_lea.vmem [#allocation2], 12
    %v1975 = vld [vmem:[%s1974] ss:$16 sm:$0x3]
    %s1976 = scalar_lea.vmem [#allocation2], 13
    %v1977 = vld [vmem:[%s1976] ss:$16 sm:$0x3]
    %s1978 = scalar_lea.vmem [#allocation2], 14
    %v1979 = vld [vmem:[%s1978] ss:$16 sm:$0x3]
    %s1980 = scalar_lea.vmem [#allocation2], 15
    %v1981 = vld [vmem:[%s1980] ss:$16 sm:$0x3]
    %1983 = vrot.lane.b32.xlu0 %v1953, 16
    %v1984 = vpop.permute.xlu0 %1983
    %1987 = vrot.lane.b32.xlu0 %v1955, 32
    %v1988 = vpop.permute.xlu0 %1987
    %1991 = vrot.lane.b32.xlu0 %v1957, 48
    %v1992 = vpop.permute.xlu0 %1991
    %1995 = vrot.lane.b32.xlu0 %v1959, 64
    %v1996 = vpop.permute.xlu0 %1995
    %1999 = vrot.lane.b32.xlu0 %v1961, 80
    %v2000 = vpop.permute.xlu0 %1999
    %2003 = vrot.lane.b32.xlu0 %v1963, 96
    %v2004 = vpop.permute.xlu0 %2003
    %2007 = vrot.lane.b32.xlu0 %v1965, 112
    %v2008 = vpop.permute.xlu0 %2007
    %2011 = vrot.lane.b32.xlu0 %v1969, 16
    %v2012 = vpop.permute.xlu0 %2011
    %2015 = vrot.lane.b32.xlu0 %v1971, 32
    %v2016 = vpop.permute.xlu0 %2015
    %2019 = vrot.lane.b32.xlu0 %v1973, 48
    %v2020 = vpop.permute.xlu0 %2019
    %2023 = vrot.lane.b32.xlu0 %v1975, 64
    %v2024 = vpop.permute.xlu0 %2023
    %2027 = vrot.lane.b32.xlu0 %v1977, 80
    %v2028 = vpop.permute.xlu0 %2027
    %2031 = vrot.lane.b32.xlu0 %v1979, 96
    %v2032 = vpop.permute.xlu0 %2031
    %2035 = vrot.lane.b32.xlu0 %v1981, 112
    %v2036 = vpop.permute.xlu0 %2035
    %v2038 = vsel %vm458, %v1951, %v1984
    %v2039 = vsel %vm61, %v2038, %v1988
    %v2040 = vsel %vm635, %v2039, %v1992
    %v2041 = vsel %vm640, %v2040, %v1996
    %v2042 = vsel %vm645, %v2041, %v2000
    %v2043 = vsel %vm650, %v2042, %v2004
    %v2044 = vsel %vm429, %v2043, %v2008
    %v2045 = vsel %vm458, %v1967, %v2012
    %v2046 = vsel %vm61, %v2045, %v2016
    %v2047 = vsel %vm635, %v2046, %v2020
    %v2048 = vsel %vm640, %v2047, %v2024
    %v2049 = vsel %vm645, %v2048, %v2028
    %v2050 = vsel %vm650, %v2049, %v2032
    %v2051 = vsel %vm429, %v2050, %v2036
    %v2052 = vld [vmem:[%s11] sm:$0xff]
    %v2053 = vld [vmem:[%s11 + $0x8] sm:$0xff]
    %v2054 = vld [vmem:[%s11 + $0x10] sm:$0xff]
    %v2055 = vld [vmem:[%s11 + $0x18] sm:$0xff]
    %v2056 = vld [vmem:[%s11 + $0x20] sm:$0xff]
    %v2057 = vld [vmem:[%s11 + $0x28] sm:$0xff]
    %v2058 = vld [vmem:[%s11 + $0x30] sm:$0xff]
    %v2059 = vld [vmem:[%s11 + $0x38] sm:$0xff]
    %v2060 = vld [vmem:[%s11 + $0x40] sm:$0xff]
    %v2061 = vld [vmem:[%s11 + $0x48] sm:$0xff]
    %v2062 = vld [vmem:[%s11 + $0x50] sm:$0xff]
    %v2063 = vld [vmem:[%s11 + $0x58] sm:$0xff]
    %v2064 = vld [vmem:[%s11 + $0x60] sm:$0xff]
    %v2065 = vld [vmem:[%s11 + $0x68] sm:$0xff]
    %v2066 = vld [vmem:[%s11 + $0x70] sm:$0xff]
    %v2067 = vld [vmem:[%s11 + $0x78] sm:$0xff]
    %v2068 = vld [vmem:[%s11 + $0x80] sm:$0xff]
    %v2069 = vld [vmem:[%s11 + $0x88] sm:$0xff]
    %v2070 = vld [vmem:[%s11 + $0x90] sm:$0xff]
    %v2071 = vld [vmem:[%s11 + $0x98] sm:$0xff]
    %v2072 = vld [vmem:[%s11 + $0xa0] sm:$0xff]
    %v2073 = vld [vmem:[%s11 + $0xa8] sm:$0xff]
    %v2074 = vld [vmem:[%s11 + $0xb0] sm:$0xff]
    %v2075 = vld [vmem:[%s11 + $0xb8] sm:$0xff]
    %v2076 = vld [vmem:[%s11 + $0xc0] sm:$0xff]
    %v2077 = vld [vmem:[%s11 + $0xc8] sm:$0xff]
    %v2078 = vld [vmem:[%s11 + $0xd0] sm:$0xff]
    %v2079 = vld [vmem:[%s11 + $0xd8] sm:$0xff]
    %v2080 = vld [vmem:[%s11 + $0xe0] sm:$0xff]
    %v2081 = vld [vmem:[%s11 + $0xe8] sm:$0xff]
    %v2082 = vld [vmem:[%s11 + $0xf0] sm:$0xff]
    %v2083 = vld [vmem:[%s11 + $0xf8] sm:$0xff]
    %v2084 = vld [vmem:[%s12] sm:$0x1]
    %v2086 = vlaneseq
    %v2087 = vshrl.u32 %v2086, 7
    %v2088 = vsub.s32 0, %v2087
    %v2089 = vrot.slane %v2084, %v2088
    %2091 = vmatprep.subr.mxu0 0.0
    %2092 = vmatpush1.msra.mxu0 %v2052
    %2093 = vmatprep.subr.mxu0 0.0
    %2094 = vmatpush1.msra.mxu0 %v2053
    %2095 = vmatprep.subr.mxu0 0.0
    %2096 = vmatpush1.msra.mxu0 %v2054
    %2097 = vmatprep.subr.mxu0 0.0
    %2098 = vmatpush1.msra.mxu0 %v2055
    %2099 = vmatprep.subr.mxu0 0.0
    %2100 = vmatpush1.msra.mxu0 %v2056
    %2101 = vmatprep.subr.mxu0 0.0
    %2102 = vmatpush1.msra.mxu0 %v2057
    %2103 = vmatprep.subr.mxu0 0.0
    %2104 = vmatpush1.msra.mxu0 %v2058
    %2105 = vmatprep.subr.mxu0 0.0
    %2106 = vmatpush1.msra.mxu0 %v2059
    %2107 = vmatprep.subr.mxu0 0.0
    %2108 = vmatpush1.msra.mxu0 %v2060
    %2109 = vmatprep.subr.mxu0 0.0
    %2110 = vmatpush1.msra.mxu0 %v2061
    %2111 = vmatprep.subr.mxu0 0.0
    %2112 = vmatpush1.msra.mxu0 %v2062
    %2113 = vmatprep.subr.mxu0 0.0
    %2114 = vmatpush1.msra.mxu0 %v2063
    %2115 = vmatprep.subr.mxu0 0.0
    %2116 = vmatpush1.msra.mxu0 %v2064
    %2117 = vmatprep.subr.mxu0 0.0
    %2118 = vmatpush1.msra.mxu0 %v2065
    %2119 = vmatprep.subr.mxu0 0.0
    %2120 = vmatpush1.msra.mxu0 %v2066
    %2121 = vmatprep.subr.mxu0 0.0
    %2122 = vmatpush1.msra.mxu0 %v2067
    %2123 = vmatprep.subr.mxu0 0.0
    %2124 = vmatpush1.msra.mxu0 %v2068
    %2125 = vmatprep.subr.mxu0 0.0
    %2126 = vmatpush1.msra.mxu0 %v2069
    %2127 = vmatprep.subr.mxu0 0.0
    %2128 = vmatpush1.msra.mxu0 %v2070
    %2129 = vmatprep.subr.mxu0 0.0
    %2130 = vmatpush1.msra.mxu0 %v2071
    %2131 = vmatprep.subr.mxu0 0.0
    %2132 = vmatpush1.msra.mxu0 %v2072
    %2133 = vmatprep.subr.mxu0 0.0
    %2134 = vmatpush1.msra.mxu0 %v2073
    %2135 = vmatprep.subr.mxu0 0.0
    %2136 = vmatpush1.msra.mxu0 %v2074
    %2137 = vmatprep.subr.mxu0 0.0
    %2138 = vmatpush1.msra.mxu0 %v2075
    %2139 = vmatprep.subr.mxu0 0.0
    %2140 = vmatpush1.msra.mxu0 %v2076
    %2141 = vmatprep.subr.mxu0 0.0
    %2142 = vmatpush1.msra.mxu0 %v2077
    %2143 = vmatprep.subr.mxu0 0.0
    %2144 = vmatpush1.msra.mxu0 %v2078
    %2145 = vmatprep.subr.mxu0 0.0
    %2146 = vmatpush1.msra.mxu0 %v2079
    %2147 = vmatprep.subr.mxu0 0.0
    %2148 = vmatpush1.msra.mxu0 %v2080
    %2149 = vmatprep.subr.mxu0 0.0
    %2150 = vmatpush1.msra.mxu0 %v2081
    %2151 = vmatprep.subr.mxu0 0.0
    %2152 = vmatpush1.msra.mxu0 %v2082
    %2153 = vmatprep.subr.mxu0 0.0
    %2154 = vmatpush1.msra.mxu0 %v2083
    %2155 = vmatprep.mubr.f32.mxu0 %v2051
    %2156 = vmatmul.mubr.f32.gmra.mrb[0].mxu0 %v2044
    %v2157 = vpop.f32.mrb[0].mxu0
    %v2158 = vadd.f32 %v2089, %v2157
    %v2159 = vpop.f32.mrb[0].mxu0
    %2160 = vdwg.mxu0
    %v2161 = vmax.f32 %v2158, 0.0
    %v2162 = vmul.f32 %v2161, %v2161
    %vm2163 = vcmask 1041408
    %v2164 = vsel %vm2163, %v2162, 0.0
    %2165 = vadd.xlane.f32.xlu0 %v2164
    %v2166 = vpop.xlane.xlu0 %2165
    %v2167 = vmax.f32 %v2166, 1e-24
    %v2168 = vrsqrt.pop %v2167
    %v2169 = vmul.f32 %v2161, %v2168
    %2170 = vst [vmem:[#allocation3] sm:$0x3] %v2169
    // Predicated region
    $region54: #{tpu_custom_call.1} parent=1 // pred_check
      _
    $region55: #{tpu_custom_call.1} parent=1 // pred_check_branch
      %2172 = sbr.rel (0) target = $region57
    $region56: #{tpu_custom_call.1} parent=1 // pred_region
      %s2174 = ssub.s32 32, 32
      %2175 = vsyncadd [#allocation4], %s2174
      %s2177 = sshll.u32 [#allocation3], 4
      %s2178 = int_to_ptr.vmem [resolvable:$true] %s2177
      %2180 = dma.vmem_to_hbm [thread:$0]  %s2178, 32, %s13, [#allocation4]
    $region57: #{tpu_custom_call.1} parent=1 // pred_fallthru
      _
    // Predicated region
    $region58: #{tpu_custom_call.1} parent=1 // pred_check
      _
    $region59: #{tpu_custom_call.1} parent=1 // pred_check_branch
      %2182 = sbr.rel (0) target = $region61
    $region60: #{tpu_custom_call.1} parent=1 // pred_region
      %2183 = dma.done [#allocation4], 32
    $region61: #{tpu_custom_call.1} parent=1 // pred_fallthru
      _
    %2184 = vsyncpa [#allocation4], 1

</llo_original>
